<compile_context>
chip_gen: v6e
topology: v6e:2x2x1
jax: 0.10.0
libtpu: 0.0.40
codegen_flags: <defaults>
</compile_context>

<pallas_src>
import functools

import jax
import jax.numpy as jnp
from jax.experimental import pallas as pl
from jax.experimental.pallas import tpu as pltpu


_NEG_BIG = -1e30  # finite "-inf" for masking (NaN-safe even if a tile were fully masked)


@functools.lru_cache(maxsize=None)
def _vmem_limit_bytes():
    # ~72% of per-core physical VMEM (v5e/v6e: 128 MiB -> ~92 MiB, v7x: 64 MiB
    # -> ~46 MiB), capped at 100 MiB.  Conservative 48 MiB fallback.
    try:
        cap = int(pltpu.get_tpu_info().vmem_capacity_bytes)
        return min(int(cap * 0.72), 100 * 1024 * 1024)
    except Exception:
        return 48 * 1024 * 1024


def _sublane_multiple(dtype):
    return {4: 8, 2: 16, 1: 32}.get(jnp.dtype(dtype).itemsize, 8)


def _pick_tile_n(n, target):
    """Tile size along flattened-spatial N when N sits on the 128-lane dim."""
    if n <= target:
        return n
    return max(128, (min(target, n) // 128) * 128)


def _pick_block_seq(n, target, dtype):
    """Tile size along N when N sits on the sublane dim (attention q/kv tiles)."""
    if n <= target:
        return n
    m = _sublane_multiple(dtype)
    return max(m, (min(target, n) // m) * m)


# ----------------------------------------------------------------------------
# Kernel 1: fused cv1 + cv2.  Input arrives channels-first (B, Cin, N); the
# tile is transposed in VMEM so no XLA-level NCHW->NHWC HBM pass is needed.
# ----------------------------------------------------------------------------
def _cv12_kernel(x_ref, w1_ref, b1_ref, w2_ref, b2_ref, y1_ref, y2_ref):
    f32 = jnp.float32
    cd = w1_ref.dtype
    xt = jnp.transpose(x_ref[0]).astype(cd)                       # (tn, Cin)
    h1 = jnp.dot(xt, w1_ref[...], preferred_element_type=f32) + b1_ref[...].astype(f32)
    h2 = jnp.dot(xt, w2_ref[...], preferred_element_type=f32) + b2_ref[...].astype(f32)
    y1_ref[0] = (h1 * jax.nn.sigmoid(h1)).astype(y1_ref.dtype)    # SiLU in f32
    y2_ref[0] = (h2 * jax.nn.sigmoid(h2)).astype(y2_ref.dtype)


def conv_cv12(x_cf, w1, b1, w2, b2, *, out_dtype, tile_n=1024):
    B, Cin, N = x_cf.shape
    hidden = w1.shape[1]
    tn = _pick_tile_n(N, tile_n)
    return pl.pallas_call(
        _cv12_kernel,
        out_shape=(jax.ShapeDtypeStruct((B, N, hidden), out_dtype),
                   jax.ShapeDtypeStruct((B, N, hidden), out_dtype)),
        grid=(B, pl.cdiv(N, tn)),
        in_specs=[
            pl.BlockSpec((1, Cin, tn), lambda b, i: (b, 0, i)),   # x (channels-first)
            pl.BlockSpec((Cin, hidden), lambda b, i: (0, 0)),
            pl.BlockSpec((1, hidden), lambda b, i: (0, 0)),
            pl.BlockSpec((Cin, hidden), lambda b, i: (0, 0)),
            pl.BlockSpec((1, hidden), lambda b, i: (0, 0)),
        ],
        out_specs=(pl.BlockSpec((1, tn, hidden), lambda b, i: (b, i, 0)),
                   pl.BlockSpec((1, tn, hidden), lambda b, i: (b, i, 0))),
        compiler_params=pltpu.CompilerParams(
            dimension_semantics=("parallel", "parallel"),
            vmem_limit_bytes=_vmem_limit_bytes()),
    )(x_cf, w1, b1, w2, b2)


# ----------------------------------------------------------------------------
# Kernel 2: flash-style SelfAttention.
#   q/k/v act directly on y1 with composed weights ((I+W_lin)@W, b_lin@W + b);
#   W_k is folded into the q side (b_k dropped: softmax-invariant), so the kv
#   stream only pays the V projection.  MXU operands forced to bf16.
# ----------------------------------------------------------------------------
def _attn_kernel(yq_ref, ykv_ref, wl_ref, bl_ref, wq_ref, bq_ref, wkT_ref,
                 wv_ref, bv_ref, gamma_ref, o_ref,
                 qt_sc, m_sc, l_sc, acc_sc, *, n_valid, block_k, mask_kv, mxu):
    f32 = jnp.float32
    kv = pl.program_id(2)

    @pl.when(kv == 0)
    def _init():
        yq = yq_ref[0].astype(mxu)                                # (TQ, C)
        q = jnp.dot(yq, wq_ref[...].astype(mxu),
                    preferred_element_type=f32) + bq_ref[...].astype(f32)
        # s = (q @ Wk'^T) @ ykv^T  -> K never re-projected per kv tile.
        qt_sc[...] = jnp.dot(q.astype(mxu), wkT_ref[...].astype(mxu),
                             preferred_element_type=f32)
        m_sc[...] = jnp.full_like(m_sc, _NEG_BIG)
        l_sc[...] = jnp.zeros_like(l_sc)
        acc_sc[...] = jnp.zeros_like(acc_sc)

    ykv = ykv_ref[0]                                              # (TK, C)
    s = jax.lax.dot_general(qt_sc[...].astype(mxu), ykv.astype(mxu),
                            (((1,), (1,)), ((), ())),
                            preferred_element_type=f32)           # (TQ, TK)
    v = jnp.dot(ykv.astype(mxu), wv_ref[...].astype(mxu),
                preferred_element_type=f32) + bv_ref[...].astype(f32)
    if mask_kv:  # only generated when N % block_k != 0
        col = kv * block_k + jax.lax.broadcasted_iota(jnp.int32, (1, block_k), 1)
        s = jnp.where(col < n_valid, s, _NEG_BIG)
        row = kv * block_k + jax.lax.broadcasted_iota(jnp.int32, (block_k, 1), 0)
        v = jnp.where(row < n_valid, v, 0.0)

    m_prev = m_sc[...]
    m_new = jnp.maximum(m_prev, jnp.max(s, axis=-1, keepdims=True))
    alpha = jnp.exp(m_prev - m_new)
    p = jnp.exp(s - m_new)
    l_sc[...] = alpha * l_sc[...] + jnp.sum(p, axis=-1, keepdims=True)
    acc_sc[...] = alpha * acc_sc[...] + jnp.dot(
        p.astype(mxu), v.astype(mxu), preferred_element_type=f32)
    m_sc[...] = m_new

    @pl.when(kv == pl.num_programs(2) - 1)
    def _fin():
        yq = yq_ref[0]
        zq = yq.astype(f32) + (
            jnp.dot(yq.astype(mxu), wl_ref[...].astype(mxu),
                    preferred_element_type=f32) + bl_ref[...].astype(f32))
        denom = l_sc[...]
        r = pl.reciprocal(denom, approx=True)   # EUP slot (otherwise idle)
        r = r * (2.0 - denom * r)               # one Newton step
        o_ref[0] = (gamma_ref[0] * (acc_sc[...] * r) + zq).astype(o_ref.dtype)


def self_attention(y1_bnc, w_lin, b_lin, w_q, b_q, w_kT, w_v, b_v, gamma,
                   *, block_q=512, block_k=512, mxu_dtype=jnp.bfloat16):
    B, N, C = y1_bnc.shape
    c8 = w_q.shape[1]
    bq = _pick_block_seq(N, block_q, y1_bnc.dtype)
    bk = _pick_block_seq(N, block_k, y1_bnc.dtype)
    nq = pl.cdiv(N, bq)
    nkv = pl.cdiv(N, bk)
    kern = functools.partial(_attn_kernel, n_valid=N, block_k=bk,
                             mask_kv=(N % bk) != 0, mxu=mxu_dtype)
    # TODO(synk): single-buffer the grid-invariant weight BlockSpecs
    # (pipeline_mode=pl.Buffered(1)) once that kwarg is uniformly available.
    return pl.pallas_call(
        kern,
        out_shape=jax.ShapeDtypeStruct((B, N, C), y1_bnc.dtype),
        grid=(B, nq, nkv),
        in_specs=[
            pl.BlockSpec((1, bq, C), lambda b, qi, ki: (b, qi, 0)),   # y1 (q tile)
            pl.BlockSpec((1, bk, C), lambda b, qi, ki: (b, ki, 0)),   # y1 (kv tile)
            pl.BlockSpec((C, C), lambda b, qi, ki: (0, 0)),           # W_lin
            pl.BlockSpec((1, C), lambda b, qi, ki: (0, 0)),           # b_lin
            pl.BlockSpec((C, c8), lambda b, qi, ki: (0, 0)),          # W_q'
            pl.BlockSpec((1, c8), lambda b, qi, ki: (0, 0)),          # b_q'
            pl.BlockSpec((c8, C), lambda b, qi, ki: (0, 0)),          # W_k'^T
            pl.BlockSpec((C, C), lambda b, qi, ki: (0, 0)),           # W_v'
            pl.BlockSpec((1, C), lambda b, qi, ki: (0, 0)),           # b_v'
            pl.BlockSpec(memory_space=pltpu.MemorySpace.SMEM),        # gamma
        ],
        out_specs=pl.BlockSpec((1, bq, C), lambda b, qi, ki: (b, qi, 0)),
        scratch_shapes=[
            pltpu.VMEM((bq, C), jnp.float32),     # q @ Wk'^T
            pltpu.VMEM((bq, 1), jnp.float32),     # running max
            pltpu.VMEM((bq, 1), jnp.float32),     # running sum
            pltpu.VMEM((bq, C), jnp.float32),     # output accumulator
        ],
        compiler_params=pltpu.CompilerParams(
            dimension_semantics=("parallel", "parallel", "arbitrary"),
            vmem_limit_bytes=_vmem_limit_bytes()),
    )(y1_bnc, y1_bnc, w_lin, b_lin, w_q, b_q, w_kT, w_v, b_v, gamma)


# ----------------------------------------------------------------------------
# Kernel 3: cv3 with split weights (no concat); writes output directly in NCHW.
# ----------------------------------------------------------------------------
def _cv3_kernel(a_ref, y2_ref, w3a_ref, w3b_ref, b3_ref, o_ref):
    f32 = jnp.float32
    acc = jnp.dot(a_ref[0], w3a_ref[...], preferred_element_type=f32)
    acc = acc + jnp.dot(y2_ref[0], w3b_ref[...], preferred_element_type=f32)
    acc = acc + b3_ref[...].astype(f32)
    act = acc * jax.nn.sigmoid(acc)                       # (tn, Cout) f32
    # Transpose in VMEM -> store a (Cout, tn) block of the NCHW output.
    o_ref[0] = jnp.transpose(act).astype(o_ref.dtype)


def conv_cv3(a_bnc, y2_bnc, w3a, w3b, b3, *, out_dtype, tile_n=1024):
    B, N, hidden = a_bnc.shape
    out_dim = w3a.shape[1]
    tn = _pick_tile_n(N, tile_n)
    return pl.pallas_call(
        _cv3_kernel,
        out_shape=jax.ShapeDtypeStruct((B, out_dim, N), out_dtype),
        grid=(B, pl.cdiv(N, tn)),
        in_specs=[
            pl.BlockSpec((1, tn, hidden), lambda b, i: (b, i, 0)),
            pl.BlockSpec((1, tn, hidden), lambda b, i: (b, i, 0)),
            pl.BlockSpec((hidden, out_dim), lambda b, i: (0, 0)),
            pl.BlockSpec((hidden, out_dim), lambda b, i: (0, 0)),
            pl.BlockSpec((1, out_dim), lambda b, i: (0, 0)),
        ],
        out_specs=pl.BlockSpec((1, out_dim, tn), lambda b, i: (b, 0, i)),
        compiler_params=pltpu.CompilerParams(
            dimension_semantics=("parallel", "parallel"),
            vmem_limit_bytes=_vmem_limit_bytes()),
    )(a_bnc, y2_bnc, w3a, w3b, b3)


# ----------------------------------------------------------------------------
# Full C3SA forward.  Only reshapes (views) and small weight folds remain in
# plain JAX; no HBM-level transposes or casts of activations.
# ----------------------------------------------------------------------------
def c3sa_forward(x_nchw, params, *, compute_dtype=jnp.bfloat16,
                 tile_n=1024, block_q=512, block_k=512):
    p = params
    f32 = jnp.float32
    cd = compute_dtype
    B, Cin, H, W = x_nchw.shape
    N = H * W
    hidden = p["w_cv1"].shape[1]

    x_cf = x_nchw.reshape(B, Cin, N)          # view; transpose folded into cv12

    y1, y2 = conv_cv12(x_cf,
                       p["w_cv1"].astype(cd), p["b_cv1"].astype(cd),
                       p["w_cv2"].astype(cd), p["b_cv2"].astype(cd),
                       out_dtype=cd, tile_n=tile_n)

    # Fold AttentionBlock's residual Linear into the q/k/v projections:
    #   z = y1 @ (I + W_lin) + b_lin  =>  proj = y1 @ ((I+W_lin)W) + (b_lin W + b)
    # and fold W_k' into the q side (b_k is softmax-invariant and dropped).
    eye = jnp.eye(hidden, dtype=f32)
    m_lin = eye + p["w_lin"].astype(f32)
    wq_e = m_lin @ p["w_q"]
    bq_e = p["b_lin"] @ p["w_q"] + p["b_q"]
    wkT_e = (m_lin @ p["w_k"]).T              # (c8, hidden): q_tilde = q @ Wk'^T
    wv_e = m_lin @ p["w_v"]
    bv_e = p["b_lin"] @ p["w_v"] + p["b_v"]

    a = self_attention(y1,
                       p["w_lin"].astype(cd), p["b_lin"].astype(cd),
                       wq_e.astype(cd), bq_e.astype(cd), wkT_e.astype(cd),
                       wv_e.astype(cd), bv_e.astype(cd),
                       p["gamma"].astype(f32),
                       block_q=block_q, block_k=block_k)

    out_cf = conv_cv3(a, y2,
                      p["w_cv3"][:hidden].astype(cd),
                      p["w_cv3"][hidden:].astype(cd),
                      p["b_cv3"].astype(cd),
                      out_dtype=x_nchw.dtype, tile_n=tile_n)
    out_dim = out_cf.shape[1]
    return out_cf.reshape(B, out_dim, H, W)   # view; output already NCHW


# ----------------------------------------------------------------------------
# Pure-JAX reference (for correctness check)
# ----------------------------------------------------------------------------
def _silu(x):
    return x * jax.nn.sigmoid(x)


def ref_forward(x_nchw, p):
    B, Cin, H, W = x_nchw.shape
    N = H * W
    x = jnp.transpose(x_nchw, (0, 2, 3, 1)).reshape(B, N, Cin)
    y1 = _silu(x @ p["w_cv1"] + p["b_cv1"])
    y2 = _silu(x @ p["w_cv2"] + p["b_cv2"])
    z = y1 + (y1 @ p["w_lin"] + p["b_lin"])
    q = z @ p["w_q"] + p["b_q"]
    k = z @ p["w_k"] + p["b_k"]
    v = z @ p["w_v"] + p["b_v"]
    energy = jnp.einsum("bnc,bmc->bnm", q, k)
    att = jax.nn.softmax(energy, axis=-1)
    out = jnp.einsum("bnm,bmc->bnc", att, v)
    a = p["gamma"][0] * out + z
    cat = jnp.concatenate([a, y2], axis=-1)
    o = _silu(cat @ p["w_cv3"] + p["b_cv3"])
    out_dim = o.shape[-1]
    return jnp.transpose(o.reshape(B, H, W, out_dim), (0, 3, 1, 2))


# ----------------------------------------------------------------------------
def make_params(key, in_dim, out_dim, e=0.5):
    hidden = int(out_dim * e)
    c8 = hidden // 8
    ks = jax.random.split(key, 14)

    def w(k, shape):
        scale = 0.5 / (shape[0] ** 0.5)
        return (scale * jax.random.normal(k, shape)).astype(jnp.float32)

    def b(k, shape):
        return (0.1 * jax.random.normal(k, shape)).astype(jnp.float32)

    return {
        # cv1 / cv2 / cv3: Conv2d(1x1) with BN folded in + SiLU
        "w_cv1": w(ks[0], (in_dim, hidden)), "b_cv1": b(ks[1], (1, hidden)),
        "w_cv2": w(ks[2], (in_dim, hidden)), "b_cv2": b(ks[3], (1, hidden)),
        "w_cv3": w(ks[4], (2 * hidden, out_dim)), "b_cv3": b(ks[5], (1, out_dim)),
        # AttentionBlock.linear (stored already transposed: (in, out))
        "w_lin": w(ks[6], (hidden, hidden)), "b_lin": b(ks[7], (1, hidden)),
        # SelfAttention q / k / v (1x1 convs with bias)
        "w_q": w(ks[8], (hidden, c8)), "b_q": b(ks[9], (1, c8)),
        "w_k": w(ks[10], (hidden, c8)), "b_k": b(ks[11], (1, c8)),
        "w_v": w(ks[12], (hidden, hidden)), "b_v": b(ks[13], (1, hidden)),
        # gamma: PyTorch inits this to 0 (making attention a no-op); use a
        # nonzero deterministic value so the attention path is exercised.
        "gamma": jnp.full((1,), 0.5, jnp.float32),
    }


if __name__ == "__main__":
    B, in_dim, out_dim, H, W = 2, 128, 128, 16, 16
    key = jax.random.PRNGKey(0)
    kx, kp = jax.random.split(key)
    x = jax.random.normal(kx, (B, in_dim, H, W), jnp.float32)
    params = make_params(kp, in_dim, out_dim)

    ref = jax.block_until_ready(ref_forward(x, params))

    # f32 storage path (attention MXU operands are bf16 with f32 accumulation)
    out_f32 = jax.block_until_ready(
        c3sa_forward(x, params, compute_dtype=jnp.float32))
    assert out_f32.shape == (B, out_dim, H, W), out_f32.shape
    max_err = float(jnp.max(jnp.abs(out_f32 - ref)))
    assert jnp.allclose(out_f32, ref, atol=3e-2, rtol=3e-2), max_err

    # default bf16 storage path: shape / finiteness / gross agreement check
    out_bf16 = jax.block_until_ready(c3sa_forward(x, params))
    assert out_bf16.shape == (B, out_dim, H, W), out_bf16.shape
    obf = out_bf16.astype(jnp.float32)
    assert bool(jnp.all(jnp.isfinite(obf)))
    assert float(jnp.max(jnp.abs(obf - ref))) < 1.0

    print("KERNEL_OK")
</pallas_src>

<mosaic_0001>
module attributes {stable_mosaic.version = 11 : i64} {
  func.func @_cv12_kernel(%arg0: i32, %arg1: i32, %arg2: memref<1x128x256xf32, #tpu.memory_space<vmem>>, %arg3: memref<128x64xf32, #tpu.memory_space<vmem>>, %arg4: memref<1x64xf32, #tpu.memory_space<vmem>>, %arg5: memref<128x64xf32, #tpu.memory_space<vmem>>, %arg6: memref<1x64xf32, #tpu.memory_space<vmem>>, %arg7: memref<1x256x64xf32, #tpu.memory_space<vmem>>, %arg8: memref<1x256x64xf32, #tpu.memory_space<vmem>>) attributes {dimension_semantics = [#tpu.dimension_semantics<parallel>, #tpu.dimension_semantics<parallel>], iteration_bounds = array<i64: 2, 1>, scalar_prefetch = 0 : i64, scratch_operands = 0 : i64, tpu.core_type = #tpu.core_type<tc>, window_params = [{transform_indices = @transform_0, window_bounds = array<i64: 1, 128, 256>}, {pipeline_mode = #tpu.pipeline_mode<synchronous>, transform_indices = @transform_1, window_bounds = array<i64: 128, 64>}, {pipeline_mode = #tpu.pipeline_mode<synchronous>, transform_indices = @transform_2, window_bounds = array<i64: 1, 64>}, {pipeline_mode = #tpu.pipeline_mode<synchronous>, transform_indices = @transform_3, window_bounds = array<i64: 128, 64>}, {pipeline_mode = #tpu.pipeline_mode<synchronous>, transform_indices = @transform_4, window_bounds = array<i64: 1, 64>}, {transform_indices = @transform_5, window_bounds = array<i64: 1, 256, 64>}, {transform_indices = @transform_6, window_bounds = array<i64: 1, 256, 64>}]} {
    %c0 = arith.constant 0 : index
    %c0_0 = arith.constant 0 : index
    %c0_1 = arith.constant 0 : index
    %0 = vector.load %arg2[%c0, %c0_0, %c0_1] : memref<1x128x256xf32, #tpu.memory_space<vmem>>, vector<1x128x256xf32>
    %1 = vector.shape_cast %0 : vector<1x128x256xf32> to vector<128x256xf32>
    %2 = tpu.transpose %1, [1, 0] : vector<128x256xf32> -> vector<256x128xf32>
    %c0_2 = arith.constant 0 : index
    %c0_3 = arith.constant 0 : index
    %3 = vector.load %arg3[%c0_2, %c0_3] : memref<128x64xf32, #tpu.memory_space<vmem>>, vector<128x64xf32>
    %cst = arith.constant dense<0.000000e+00> : vector<256x64xf32>
    %4 = tpu.matmul %2, %3, %cst {dimension_numbers = #tpu.dot_dimension_numbers<[1], [0], [0], [1], [0, 0, 1, 1], [], []>} : vector<256x128xf32>, vector<128x64xf32>, vector<256x64xf32> -> vector<256x64xf32>
    %c0_4 = arith.constant 0 : index
    %c0_5 = arith.constant 0 : index
    %5 = vector.load %arg4[%c0_4, %c0_5] : memref<1x64xf32, #tpu.memory_space<vmem>>, vector<1x64xf32>
    %6 = vector.broadcast %5 : vector<1x64xf32> to vector<256x64xf32>
    %7 = arith.addf %4, %6 : vector<256x64xf32>
    %c0_6 = arith.constant 0 : index
    %c0_7 = arith.constant 0 : index
    %8 = vector.load %arg5[%c0_6, %c0_7] : memref<128x64xf32, #tpu.memory_space<vmem>>, vector<128x64xf32>
    %cst_8 = arith.constant dense<0.000000e+00> : vector<256x64xf32>
    %9 = tpu.matmul %2, %8, %cst_8 {dimension_numbers = #tpu.dot_dimension_numbers<[1], [0], [0], [1], [0, 0, 1, 1], [], []>} : vector<256x128xf32>, vector<128x64xf32>, vector<256x64xf32> -> vector<256x64xf32>
    %c0_9 = arith.constant 0 : index
    %c0_10 = arith.constant 0 : index
    %10 = vector.load %arg6[%c0_9, %c0_10] : memref<1x64xf32, #tpu.memory_space<vmem>>, vector<1x64xf32>
    %11 = vector.broadcast %10 : vector<1x64xf32> to vector<256x64xf32>
    %12 = arith.addf %9, %11 : vector<256x64xf32>
    %13 = arith.negf %7 : vector<256x64xf32>
    %14 = math.exp %13 : vector<256x64xf32>
    %cst_11 = arith.constant 1.000000e+00 : f32
    %15 = vector.broadcast %cst_11 : f32 to vector<256x64xf32>
    %16 = arith.addf %15, %14 : vector<256x64xf32>
    %17 = arith.divf %15, %16 : vector<256x64xf32>
    %18 = arith.mulf %7, %17 : vector<256x64xf32>
    %c0_12 = arith.constant 0 : index
    %c0_13 = arith.constant 0 : index
    %c0_14 = arith.constant 0 : index
    %19 = vector.load %arg7[%c0_12, %c0_13, %c0_14] : memref<1x256x64xf32, #tpu.memory_space<vmem>>, vector<1x256x64xf32>
    %20 = vector.shape_cast %19 : vector<1x256x64xf32> to vector<256x64xf32>
    %21 = vector.shape_cast %18 : vector<256x64xf32> to vector<1x256x64xf32>
    tpu.vector_store %arg7[%c0_12, %c0_13, %c0_14], %21 {strides = array<i32>} : memref<1x256x64xf32, #tpu.memory_space<vmem>>, vector<1x256x64xf32>,
    %22 = arith.negf %12 : vector<256x64xf32>
    %23 = math.exp %22 : vector<256x64xf32>
    %cst_15 = arith.constant 1.000000e+00 : f32
    %24 = vector.broadcast %cst_15 : f32 to vector<256x64xf32>
    %25 = arith.addf %24, %23 : vector<256x64xf32>
    %26 = arith.divf %24, %25 : vector<256x64xf32>
    %27 = arith.mulf %12, %26 : vector<256x64xf32>
    %c0_16 = arith.constant 0 : index
    %c0_17 = arith.constant 0 : index
    %c0_18 = arith.constant 0 : index
    %28 = vector.load %arg8[%c0_16, %c0_17, %c0_18] : memref<1x256x64xf32, #tpu.memory_space<vmem>>, vector<1x256x64xf32>
    %29 = vector.shape_cast %28 : vector<1x256x64xf32> to vector<256x64xf32>
    %30 = vector.shape_cast %27 : vector<256x64xf32> to vector<1x256x64xf32>
    tpu.vector_store %arg8[%c0_16, %c0_17, %c0_18], %30 {strides = array<i32>} : memref<1x256x64xf32, #tpu.memory_space<vmem>>, vector<1x256x64xf32>,
    return
  }
  func.func @transform_0(%arg0: i32, %arg1: i32) -> (i32, i32, i32) {
    %c0_i32 = arith.constant 0 : i32
    %c0_i32_0 = arith.constant 0 : i32
    return %arg0, %c0_i32, %arg1 : i32, i32, i32
  }
  func.func @transform_1(%arg0: i32, %arg1: i32) -> (i32, i32) {
    %c0_i32 = arith.constant 0 : i32
    %c0_i32_0 = arith.constant 0 : i32
    %c0_i32_1 = arith.constant 0 : i32
    return %c0_i32, %c0_i32_0 : i32, i32
  }
  func.func @transform_2(%arg0: i32, %arg1: i32) -> (i32, i32) {
    %c0_i32 = arith.constant 0 : i32
    %c0_i32_0 = arith.constant 0 : i32
    %c0_i32_1 = arith.constant 0 : i32
    return %c0_i32, %c0_i32_0 : i32, i32
  }
  func.func @transform_3(%arg0: i32, %arg1: i32) -> (i32, i32) {
    %c0_i32 = arith.constant 0 : i32
    %c0_i32_0 = arith.constant 0 : i32
    %c0_i32_1 = arith.constant 0 : i32
    return %c0_i32, %c0_i32_0 : i32, i32
  }
  func.func @transform_4(%arg0: i32, %arg1: i32) -> (i32, i32) {
    %c0_i32 = arith.constant 0 : i32
    %c0_i32_0 = arith.constant 0 : i32
    %c0_i32_1 = arith.constant 0 : i32
    return %c0_i32, %c0_i32_0 : i32, i32
  }
  func.func @transform_5(%arg0: i32, %arg1: i32) -> (i32, i32, i32) {
    %c0_i32 = arith.constant 0 : i32
    %c0_i32_0 = arith.constant 0 : i32
    return %arg0, %arg1, %c0_i32 : i32, i32, i32
  }
  func.func @transform_6(%arg0: i32, %arg1: i32) -> (i32, i32, i32) {
    %c0_i32 = arith.constant 0 : i32
    %c0_i32_0 = arith.constant 0 : i32
    return %arg0, %arg1, %c0_i32 : i32, i32, i32
  }
}

</mosaic_0001>

<llo_original>
// kernel: tpu_custom_call.1
$region0: #{tpu_custom_call.1}
  #allocation0 [shape = 'u32[]', space=smem, size = 0x4, offset = 0x4, fixed_abs, tag = 'smem constant byte address 0x4 - core index']
  #allocation1 [shape = 'u32[144,128]{1,0:T(1,128)}', space=vmem, size = 0x12000, scoped, tag = 'internal scratch']
  %s0 = inlined_call_operand.hbm [shape: f32[2,128,256], index: 0, kind: input, shape index: {}]
  %s1 = inlined_call_operand.vmem [shape: f32[128,64], index: 1, kind: input, shape index: {}]
  %s2 = inlined_call_operand.vmem [shape: f32[1,64], index: 2, kind: input, shape index: {}]
  %s3 = inlined_call_operand.vmem [shape: f32[128,64], index: 3, kind: input, shape index: {}]
  %s4 = inlined_call_operand.vmem [shape: f32[1,64], index: 4, kind: input, shape index: {}]
  %s5 = inlined_call_operand.vmem [shape: f32[2,256,64], index: 5, kind: output, shape index: {0}]
  %s6 = inlined_call_operand.vmem [shape: f32[2,256,64], index: 6, kind: output, shape index: {1}]
  %7 = xla_tuple %s5, %s6
  %s8 = sld [smem:[#allocation0]]
  $region65: #{tpu_custom_call.1} parent=0
    _
  %s10 = ssub.s32 1, %s8
  %s11 = scalar_select 0, %s10, %s8
  $region1: #{tpu_custom_call.1} parent=0
    #allocation2 [shape = 'u8[262144]{0}', space=vmem, size = 0x40000, scoped, tag = 'input window, operand 0']
    #allocation3 [shape = 's32[2]{0}', space=sflag, size = 0x8, scoped, tag = 'scoped memory for tpu_custom_call.1']
    %12 = vsyncpa [#allocation3], 0
    %s13 = scalar_lea.sflag [#allocation3], 1
    %14 = vsyncpa %s13, 0
    loop: start=0, step=1, limit=4
    $region2: #{tpu_custom_call.1} parent=1 // loop_pre_header
      _
    $region3: #{tpu_custom_call.1} parent=1 // loop_header
      %s16 = sphi 0, %s20
      %p17 = scmp.ge.s32.totalorder %s16, 4
      %s23 = sphi 0, %s35
      %s24 = sphi 0, %s31
      %s25 = sphi 0, %s23
      %s26 = sphi 0, %s24
      %s27 = sphi 0, %s25
      %s28 = sphi 0, %s26
      %s40 = sphi 0, %s42
      %s43 = sphi 0, %s40
      %s44 = sphi 0, %s43
      %s60 = sphi 0, %s44
      %s64 = sphi 0, %s64
      %s66 = sphi 0, %s64
      %s67 = sphi 0, %s66
      %s81 = sphi 0, %s67
      %s85 = sphi 0, %s85
      %s87 = sphi 0, %s85
      %s88 = sphi 0, %s87
      %s102 = sphi 0, %s88
      %s106 = sphi 0, %s106
      %s108 = sphi 0, %s106
      %s109 = sphi 0, %s108
      %s123 = sphi 0, %s109
      %s127 = sphi 0, %s127
      %s129 = sphi 0, %s127
      %s130 = sphi 0, %s129
      %s144 = sphi 0, %s130
      %s152 = sphi 0, %s154
      %s155 = sphi 0, %s152
      %s156 = sphi 0, %s155
      %s172 = sphi 0, %s156
      %s180 = sphi 0, %s182
      %s183 = sphi 0, %s180
      %s184 = sphi 0, %s183
      %s200 = sphi 0, %s184
    $region4: #{tpu_custom_call.1} parent=1 // loop_header_branch
      %19 = sbr.rel (%p17) target = $region8
    $region5: #{tpu_custom_call.1} parent=1 // loop_body
      %s21 = ssub.s32 %s16, 1
      %s22 = ssub.s32 %s16, 2
      %s29 = sadd.s32 1, %s24
      %p30 = scmp.ge.s32.totalorder %s29, 1
      %s31 = scalar_select %p30, 0, %s29
      %s32 = sadd.s32 1, %s23
      %s33 = scalar_select %p30, %s32, %s23
      %p34 = scmp.ge.s32.totalorder %s33, 2
      %s35 = scalar_select %p34, 0, %s33
      %s36 = ssub.s32 %s23, %s35
      %s37 = ssub.s32 %s24, %s31
      %s38 = sor.u32 %s36, %s37
      %p39 = scmp.eq.s32.totalorder %s38, 0
      %s41 = sadd.s32 %s40, 1
      %s42 = scalar_select %p39, %s40, %s41
      %p45 = pneg %p39
      %p46 = scmp.eq.s32.totalorder %s16, 1
      %p47 = por %p45, %p46
      %p48 = scmp.ne.s32.totalorder %s40, %s43
      %p49 = scmp.eq.s32.totalorder %s16, 0
      %p50 = por %p48, %p49
      %p51 = scmp.ne.s32.totalorder %s40, %s43
      %p52 = scmp.eq.s32.totalorder %s21, 1
      %p53 = por %p51, %p52
      %p54 = scmp.ne.s32.totalorder %s43, %s44
      %p55 = scmp.eq.s32.totalorder %s21, 0
      %p56 = por %p54, %p55
      %p57 = scmp.ne.s32.totalorder %s43, %s44
      %p58 = scmp.eq.s32.totalorder %s22, 1
      %p59 = por %p57, %p58
      %p61 = scmp.ne.s32.totalorder %s44, %s60
      %p62 = scmp.eq.s32.totalorder %s22, 0
      %p63 = por %p61, %p62
      %s65 = sadd.s32 %s64, 1
      %p68 = scmp.eq.s32.totalorder %s16, 1
      %p69 = scmp.ne.s32.totalorder %s64, %s66
      %p70 = scmp.eq.s32.totalorder %s16, 0
      %p71 = por %p69, %p70
      %p72 = scmp.ne.s32.totalorder %s64, %s66
      %p73 = scmp.eq.s32.totalorder %s21, 1
      %p74 = por %p72, %p73
      %p75 = scmp.ne.s32.totalorder %s66, %s67
      %p76 = scmp.eq.s32.totalorder %s21, 0
      %p77 = por %p75, %p76
      %p78 = scmp.ne.s32.totalorder %s66, %s67
      %p79 = scmp.eq.s32.totalorder %s22, 1
      %p80 = por %p78, %p79
      %p82 = scmp.ne.s32.totalorder %s67, %s81
      %p83 = scmp.eq.s32.totalorder %s22, 0
      %p84 = por %p82, %p83
      %s86 = sadd.s32 %s85, 1
      %p89 = scmp.eq.s32.totalorder %s16, 1
      %p90 = scmp.ne.s32.totalorder %s85, %s87
      %p91 = scmp.eq.s32.totalorder %s16, 0
      %p92 = por %p90, %p91
      %p93 = scmp.ne.s32.totalorder %s85, %s87
      %p94 = scmp.eq.s32.totalorder %s21, 1
      %p95 = por %p93, %p94
      %p96 = scmp.ne.s32.totalorder %s87, %s88
      %p97 = scmp.eq.s32.totalorder %s21, 0
      %p98 = por %p96, %p97
      %p99 = scmp.ne.s32.totalorder %s87, %s88
      %p100 = scmp.eq.s32.totalorder %s22, 1
      %p101 = por %p99, %p100
      %p103 = scmp.ne.s32.totalorder %s88, %s102
      %p104 = scmp.eq.s32.totalorder %s22, 0
      %p105 = por %p103, %p104
      %s107 = sadd.s32 %s106, 1
      %p110 = scmp.eq.s32.totalorder %s16, 1
      %p111 = scmp.ne.s32.totalorder %s106, %s108
      %p112 = scmp.eq.s32.totalorder %s16, 0
      %p113 = por %p111, %p112
      %p114 = scmp.ne.s32.totalorder %s106, %s108
      %p115 = scmp.eq.s32.totalorder %s21, 1
      %p116 = por %p114, %p115
      %p117 = scmp.ne.s32.totalorder %s108, %s109
      %p118 = scmp.eq.s32.totalorder %s21, 0
      %p119 = por %p117, %p118
      %p120 = scmp.ne.s32.totalorder %s108, %s109
      %p121 = scmp.eq.s32.totalorder %s22, 1
      %p122 = por %p120, %p121
      %p124 = scmp.ne.s32.totalorder %s109, %s123
      %p125 = scmp.eq.s32.totalorder %s22, 0
      %p126 = por %p124, %p125
      %s128 = sadd.s32 %s127, 1
      %p131 = scmp.eq.s32.totalorder %s16, 1
      %p132 = scmp.ne.s32.totalorder %s127, %s129
      %p133 = scmp.eq.s32.totalorder %s16, 0
      %p134 = por %p132, %p133
      %p135 = scmp.ne.s32.totalorder %s127, %s129
      %p136 = scmp.eq.s32.totalorder %s21, 1
      %p137 = por %p135, %p136
      %p138 = scmp.ne.s32.totalorder %s129, %s130
      %p139 = scmp.eq.s32.totalorder %s21, 0
      %p140 = por %p138, %p139
      %p141 = scmp.ne.s32.totalorder %s129, %s130
      %p142 = scmp.eq.s32.totalorder %s22, 1
      %p143 = por %p141, %p142
      %p145 = scmp.ne.s32.totalorder %s130, %s144
      %p146 = scmp.eq.s32.totalorder %s22, 0
      %p147 = por %p145, %p146
      %s148 = ssub.s32 %s23, %s35
      %s149 = ssub.s32 %s24, %s31
      %s150 = sor.u32 %s148, %s149
      %p151 = scmp.eq.s32.totalorder %s150, 0
      %s153 = sadd.s32 %s152, 1
      %s154 = scalar_select %p151, %s152, %s153
      %p157 = pneg %p151
      %p158 = scmp.eq.s32.totalorder %s16, 1
      %p159 = por %p157, %p158
      %p160 = scmp.ne.s32.totalorder %s152, %s155
      %p161 = scmp.eq.s32.totalorder %s16, 0
      %p162 = por %p160, %p161
      %p163 = scmp.ne.s32.totalorder %s152, %s155
      %p164 = scmp.eq.s32.totalorder %s21, 1
      %p165 = por %p163, %p164
      %p166 = scmp.ne.s32.totalorder %s155, %s156
      %p167 = scmp.eq.s32.totalorder %s21, 0
      %p168 = por %p166, %p167
      %p169 = scmp.ne.s32.totalorder %s155, %s156
      %p170 = scmp.eq.s32.totalorder %s22, 1
      %p171 = por %p169, %p170
      %p173 = scmp.ne.s32.totalorder %s156, %s172
      %p174 = scmp.eq.s32.totalorder %s22, 0
      %p175 = por %p173, %p174
      %s176 = ssub.s32 %s23, %s35
      %s177 = ssub.s32 %s24, %s31
      %s178 = sor.u32 %s176, %s177
      %p179 = scmp.eq.s32.totalorder %s178, 0
      %s181 = sadd.s32 %s180, 1
      %s182 = scalar_select %p179, %s180, %s181
      %p185 = pneg %p179
      %p186 = scmp.eq.s32.totalorder %s16, 1
      %p187 = por %p185, %p186
      %p188 = scmp.ne.s32.totalorder %s180, %s183
      %p189 = scmp.eq.s32.totalorder %s16, 0
      %p190 = por %p188, %p189
      %p191 = scmp.ne.s32.totalorder %s180, %s183
      %p192 = scmp.eq.s32.totalorder %s21, 1
      %p193 = por %p191, %p192
      %p194 = scmp.ne.s32.totalorder %s183, %s184
      %p195 = scmp.eq.s32.totalorder %s21, 0
      %p196 = por %p194, %p195
      %p197 = scmp.ne.s32.totalorder %s183, %s184
      %p198 = scmp.eq.s32.totalorder %s22, 1
      %p199 = por %p197, %p198
      %p201 = scmp.ne.s32.totalorder %s184, %s200
      %p202 = scmp.eq.s32.totalorder %s22, 0
      %p203 = por %p201, %p202
      %p204 = scmp.le.s32.totalorder 1, %s16
      %p205 = scmp.lt.s32.totalorder %s16, 3
      %p206 = pnand %p204, %p205
      %p207 = pneg %p206
      // Predicated region
      $region9: #{tpu_custom_call.1} parent=5 // pred_check
        _
      $region10: #{tpu_custom_call.1} parent=5 // pred_check_branch
        %209 = sbr.rel (%p206) target = $region12
      $region11: #{tpu_custom_call.1} parent=5 // pred_region
        %s210 = ssub.s32 %s16, 1
        // Predicated region
        $region13: #{tpu_custom_call.1} parent=11 // pred_check
          %p211 = pneg %p77
        $region14: #{tpu_custom_call.1} parent=11 // pred_check_branch
          %213 = sbr.rel (%p211) target = $region16
        $region15: #{tpu_custom_call.1} parent=11 // pred_region
          _
        $region16: #{tpu_custom_call.1} parent=11 // pred_fallthru
          _
        // Predicated region
        $region17: #{tpu_custom_call.1} parent=11 // pred_check
          %p214 = pneg %p98
        $region18: #{tpu_custom_call.1} parent=11 // pred_check_branch
          %216 = sbr.rel (%p214) target = $region20
        $region19: #{tpu_custom_call.1} parent=11 // pred_region
          _
        $region20: #{tpu_custom_call.1} parent=11 // pred_fallthru
          _
        // Predicated region
        $region21: #{tpu_custom_call.1} parent=11 // pred_check
          %p217 = pneg %p119
        $region22: #{tpu_custom_call.1} parent=11 // pred_check_branch
          %219 = sbr.rel (%p217) target = $region24
        $region23: #{tpu_custom_call.1} parent=11 // pred_region
          _
        $region24: #{tpu_custom_call.1} parent=11 // pred_fallthru
          _
        // Predicated region
        $region25: #{tpu_custom_call.1} parent=11 // pred_check
          %p220 = pneg %p140
        $region26: #{tpu_custom_call.1} parent=11 // pred_check_branch
          %222 = sbr.rel (%p220) target = $region28
        $region27: #{tpu_custom_call.1} parent=11 // pred_region
          _
        $region28: #{tpu_custom_call.1} parent=11 // pred_fallthru
          _
      $region12: #{tpu_custom_call.1} parent=5 // pred_fallthru
        _
      %p223 = scmp.lt.s32.totalorder %s16, 2
      // Predicated region
      $region29: #{tpu_custom_call.1} parent=5 // pred_check
        %p224 = pneg %p223
      $region30: #{tpu_custom_call.1} parent=5 // pred_check_branch
        %226 = sbr.rel (%p224) target = $region32
      $region31: #{tpu_custom_call.1} parent=5 // pred_region
        // Predicated region
        $region33: #{tpu_custom_call.1} parent=31 // pred_check
          %p227 = pneg %p50
        $region34: #{tpu_custom_call.1} parent=31 // pred_check_branch
          %229 = sbr.rel (%p227) target = $region36
        $region35: #{tpu_custom_call.1} parent=31 // pred_region
          %s230 = sand.u32 %s40, 1
          %s231 = scalar_lea.sflag [#allocation3], %s230
          %s232 = sand.u32 %s40, 1
          %s233 = smul.addr %s232, 256
          %s234 = scalar_lea.vmem [#allocation2], %s233
          %s235 = smul.u32 2, %s24
          %s237 = ssub.s32 4096, 4096
          %238 = vsyncadd %s231, %s237
          %s239 = smul.addr %s23, 32
          %s240 = sadd.s32 %s235, %s239
          %s241 = smul.addr %s240, 128
          %s242 = scalar_lea.hbm %s0, %s241
          %s243 = sshll.u32 %s234, 4
          %s244 = int_to_ptr.vmem [resolvable:$true] %s243
          %249 = dma.hbm_to_vmem [thread:$0]  %s242, 4096, %s244, %s231, 256, 256, 16
        $region36: #{tpu_custom_call.1} parent=31 // pred_fallthru
          _
      $region32: #{tpu_custom_call.1} parent=5 // pred_fallthru
        _
      %p250 = scmp.le.s32.totalorder 1, %s16
      %p251 = scmp.lt.s32.totalorder %s16, 3
      %p252 = pnand %p250, %p251
      %p253 = pneg %p252
      // Predicated region
      $region37: #{tpu_custom_call.1} parent=5 // pred_check
        _
      $region38: #{tpu_custom_call.1} parent=5 // pred_check_branch
        %255 = sbr.rel (%p252) target = $region40
      $region39: #{tpu_custom_call.1} parent=5 // pred_region
        %s256 = ssub.s32 %s16, 1
        %s257 = sand.u32 %s43, 1
        %s258 = scalar_lea.sflag [#allocation3], %s257
        %s259 = sand.u32 %s43, 1
        %s260 = smul.addr %s259, 256
        %s261 = scalar_lea.vmem [#allocation2], %s260
        // Predicated region
        $region41: #{tpu_custom_call.1} parent=39 // pred_check
          %p262 = pneg %p56
        $region42: #{tpu_custom_call.1} parent=39 // pred_check_branch
          %264 = sbr.rel (%p262) target = $region44
        $region43: #{tpu_custom_call.1} parent=39 // pred_region
          %265 = dma.done %s258, 4096
        $region44: #{tpu_custom_call.1} parent=39 // pred_fallthru
          _
        %s266 = sand.u32 %s43, 1
        %s267 = scalar_lea.sflag [#allocation3], %s266
        %s268 = sand.u32 %s43, 1
        %s269 = smul.addr %s268, 256
        %s270 = scalar_lea.vmem [#allocation2], %s269
        %p271 = pneg %p56
        %p272 = pneg %p53
        %p273 = pneg %p77
        %p274 = pneg %p74
        %p275 = pneg %p98
        %p276 = pneg %p95
        %p277 = pneg %p119
        %p278 = pneg %p116
        %p279 = pneg %p140
        %p280 = pneg %p137
        %p281 = pneg %p168
        %p282 = pneg %p165
        %s283 = smul.u32 32, %s26
        %p284 = scmp.lt.s32.totalorder %s25, 1
        %s285 = scalar_select %p284, %s25, 1
        %p286 = scmp.lt.s32.totalorder %s283, 31
        %s287 = scalar_select %p286, %s283, 31
        %s288 = smul.addr %s285, 32
        %s289 = sadd.s32 %s287, %s288
        %s290 = smul.addr %s289, 8
        %s291 = scalar_lea.vmem %s5, %s290
        %p292 = pneg %p196
        %p293 = pneg %p193
        %s294 = smul.u32 32, %s26
        %p295 = scmp.lt.s32.totalorder %s25, 1
        %s296 = scalar_select %p295, %s25, 1
        %p297 = scmp.lt.s32.totalorder %s294, 31
        %s298 = scalar_select %p297, %s294, 31
        %s299 = smul.addr %s296, 32
        %s300 = sadd.s32 %s298, %s299
        %s301 = smul.addr %s300, 8
        %s302 = scalar_lea.vmem %s6, %s301
        %s303 = smul.u32 2, %s26
        %s304 = smul.u32 32, %s26
        %p305 = scmp.lt.s32.totalorder %s25, 1
        %s306 = scalar_select %p305, %s25, 1
        %p307 = scmp.lt.s32.totalorder %s304, 31
        %s308 = scalar_select %p307, %s304, 31
        %s309 = smul.addr %s306, 32
        %s310 = sadd.s32 %s308, %s309
        %s311 = smul.addr %s310, 8
        %s312 = scalar_lea.vmem %s5, %s311
        %s313 = smul.u32 32, %s26
        %s314 = smul.u32 32, %s26
        %p315 = scmp.lt.s32.totalorder %s25, 1
        %s316 = scalar_select %p315, %s25, 1
        %p317 = scmp.lt.s32.totalorder %s314, 31
        %s318 = scalar_select %p317, %s314, 31
        %s319 = smul.addr %s316, 32
        %s320 = sadd.s32 %s318, %s319
        %s321 = smul.addr %s320, 8
        %s322 = scalar_lea.vmem %s6, %s321
        %s323 = smul.u32 32, %s26
        %v324 = vld [vmem:[%s261] sm:$0xff]
        %v325 = vld [vmem:[%s261 + $0x8] sm:$0xff]
        %v326 = vld [vmem:[%s261 + $0x10] sm:$0xff]
        %v327 = vld [vmem:[%s261 + $0x18] sm:$0xff]
        %v328 = vld [vmem:[%s261 + $0x20] sm:$0xff]
        %v329 = vld [vmem:[%s261 + $0x28] sm:$0xff]
        %v330 = vld [vmem:[%s261 + $0x30] sm:$0xff]
        %v331 = vld [vmem:[%s261 + $0x38] sm:$0xff]
        %v332 = vld [vmem:[%s261 + $0x40] sm:$0xff]
        %v333 = vld [vmem:[%s261 + $0x48] sm:$0xff]
        %v334 = vld [vmem:[%s261 + $0x50] sm:$0xff]
        %v335 = vld [vmem:[%s261 + $0x58] sm:$0xff]
        %v336 = vld [vmem:[%s261 + $0x60] sm:$0xff]
        %v337 = vld [vmem:[%s261 + $0x68] sm:$0xff]
        %v338 = vld [vmem:[%s261 + $0x70] sm:$0xff]
        %v339 = vld [vmem:[%s261 + $0x78] sm:$0xff]
        %v340 = vld [vmem:[%s261 + $0x80] sm:$0xff]
        %v341 = vld [vmem:[%s261 + $0x88] sm:$0xff]
        %v342 = vld [vmem:[%s261 + $0x90] sm:$0xff]
        %v343 = vld [vmem:[%s261 + $0x98] sm:$0xff]
        %v344 = vld [vmem:[%s261 + $0xa0] sm:$0xff]
        %v345 = vld [vmem:[%s261 + $0xa8] sm:$0xff]
        %v346 = vld [vmem:[%s261 + $0xb0] sm:$0xff]
        %v347 = vld [vmem:[%s261 + $0xb8] sm:$0xff]
        %v348 = vld [vmem:[%s261 + $0xc0] sm:$0xff]
        %v349 = vld [vmem:[%s261 + $0xc8] sm:$0xff]
        %v350 = vld [vmem:[%s261 + $0xd0] sm:$0xff]
        %v351 = vld [vmem:[%s261 + $0xd8] sm:$0xff]
        %v352 = vld [vmem:[%s261 + $0xe0] sm:$0xff]
        %v353 = vld [vmem:[%s261 + $0xe8] sm:$0xff]
        %v354 = vld [vmem:[%s261 + $0xf0] sm:$0xff]
        %v355 = vld [vmem:[%s261 + $0xf8] sm:$0xff]
        %356 = vxpose.xlu0.b32.start [1/16] %v324, 128
        %357 = vxpose.xlu0.b32.cont [2/16] %v326, 128
        %358 = vxpose.xlu0.b32.cont [3/16] %v328, 128
        %359 = vxpose.xlu0.b32.cont [4/16] %v330, 128
        %360 = vxpose.xlu0.b32.cont [5/16] %v332, 128
        %361 = vxpose.xlu0.b32.cont [6/16] %v334, 128
        %362 = vxpose.xlu0.b32.cont [7/16] %v336, 128
        %363 = vxpose.xlu0.b32.cont [8/16] %v338, 128
        %364 = vxpose.xlu0.b32.cont [9/16] %v340, 128
        %365 = vxpose.xlu0.b32.cont [10/16] %v342, 128
        %366 = vxpose.xlu0.b32.cont [11/16] %v344, 128
        %367 = vxpose.xlu0.b32.cont [12/16] %v346, 128
        %368 = vxpose.xlu0.b32.cont [13/16] %v348, 128
        %369 = vxpose.xlu0.b32.cont [14/16] %v350, 128
        %370 = vxpose.xlu0.b32.cont [15/16] %v352, 128
        %371 = vxpose.xlu0.b32.end [16/16] %v354, 128
        %v372 = vpop.trf.xlu0
        %v373 = vpop.trf.xlu0
        %v374 = vpop.trf.xlu0
        %v375 = vpop.trf.xlu0
        %v376 = vpop.trf.xlu0
        %v377 = vpop.trf.xlu0
        %v378 = vpop.trf.xlu0
        %v379 = vpop.trf.xlu0
        %v380 = vpop.trf.xlu0
        %v381 = vpop.trf.xlu0
        %v382 = vpop.trf.xlu0
        %v383 = vpop.trf.xlu0
        %v384 = vpop.trf.xlu0
        %v385 = vpop.trf.xlu0
        %v386 = vpop.trf.xlu0
        %v387 = vpop.trf.xlu0
        %388 = vxpose.xlu0.b32.start [1/16] %v325, 128
        %389 = vxpose.xlu0.b32.cont [2/16] %v327, 128
        %390 = vxpose.xlu0.b32.cont [3/16] %v329, 128
        %391 = vxpose.xlu0.b32.cont [4/16] %v331, 128
        %392 = vxpose.xlu0.b32.cont [5/16] %v333, 128
        %393 = vxpose.xlu0.b32.cont [6/16] %v335, 128
        %394 = vxpose.xlu0.b32.cont [7/16] %v337, 128
        %395 = vxpose.xlu0.b32.cont [8/16] %v339, 128
        %396 = vxpose.xlu0.b32.cont [9/16] %v341, 128
        %397 = vxpose.xlu0.b32.cont [10/16] %v343, 128
        %398 = vxpose.xlu0.b32.cont [11/16] %v345, 128
        %399 = vxpose.xlu0.b32.cont [12/16] %v347, 128
        %400 = vxpose.xlu0.b32.cont [13/16] %v349, 128
        %401 = vxpose.xlu0.b32.cont [14/16] %v351, 128
        %402 = vxpose.xlu0.b32.cont [15/16] %v353, 128
        %403 = vxpose.xlu0.b32.end [16/16] %v355, 128
        %v404 = vpop.trf.xlu0
        %v405 = vpop.trf.xlu0
        %v406 = vpop.trf.xlu0
        %v407 = vpop.trf.xlu0
        %v408 = vpop.trf.xlu0
        %v409 = vpop.trf.xlu0
        %v410 = vpop.trf.xlu0
        %v411 = vpop.trf.xlu0
        %v412 = vpop.trf.xlu0
        %v413 = vpop.trf.xlu0
        %v414 = vpop.trf.xlu0
        %v415 = vpop.trf.xlu0
        %v416 = vpop.trf.xlu0
        %v417 = vpop.trf.xlu0
        %v418 = vpop.trf.xlu0
        %v419 = vpop.trf.xlu0
        %v420 = vld [vmem:[%s1] sm:$0xff]
        %v421 = vld [vmem:[%s1 + $0x8] sm:$0xff]
        %v422 = vld [vmem:[%s1 + $0x10] sm:$0xff]
        %v423 = vld [vmem:[%s1 + $0x18] sm:$0xff]
        %v424 = vld [vmem:[%s1 + $0x20] sm:$0xff]
        %v425 = vld [vmem:[%s1 + $0x28] sm:$0xff]
        %v426 = vld [vmem:[%s1 + $0x30] sm:$0xff]
        %v427 = vld [vmem:[%s1 + $0x38] sm:$0xff]
        %v428 = vld [vmem:[%s1 + $0x40] sm:$0xff]
        %v429 = vld [vmem:[%s1 + $0x48] sm:$0xff]
        %v430 = vld [vmem:[%s1 + $0x50] sm:$0xff]
        %v431 = vld [vmem:[%s1 + $0x58] sm:$0xff]
        %v432 = vld [vmem:[%s1 + $0x60] sm:$0xff]
        %v433 = vld [vmem:[%s1 + $0x68] sm:$0xff]
        %v434 = vld [vmem:[%s1 + $0x70] sm:$0xff]
        %v435 = vld [vmem:[%s1 + $0x78] sm:$0xff]
        %v436 = vld [vmem:[%s2] sm:$0x1]
        %v438 = vlaneseq
        %v439 = vshrl.u32 %v438, 7
        %v440 = vsub.s32 0, %v439
        %v441 = vrot.slane %v436, %v440
        %443 = vmatprep.subr.mxu0 0.0
        %444 = vmatpush1.msra.mxu0 %v435
        %445 = vmatprep.subr.mxu0 0.0
        %446 = vmatpush1.msra.mxu0 %v434
        %447 = vmatprep.subr.mxu0 0.0
        %448 = vmatpush1.msra.mxu0 %v433
        %449 = vmatprep.subr.mxu0 0.0
        %450 = vmatpush1.msra.mxu0 %v432
        %451 = vmatprep.subr.mxu0 0.0
        %452 = vmatpush1.msra.mxu0 %v431
        %453 = vmatprep.subr.mxu0 0.0
        %454 = vmatpush1.msra.mxu0 %v430
        %455 = vmatprep.subr.mxu0 0.0
        %456 = vmatpush1.msra.mxu0 %v429
        %457 = vmatprep.subr.mxu0 0.0
        %458 = vmatpush1.msra.mxu0 %v428
        %459 = vmatprep.subr.mxu0 0.0
        %460 = vmatpush1.msra.mxu0 %v427
        %461 = vmatprep.subr.mxu0 0.0
        %462 = vmatpush1.msra.mxu0 %v426
        %463 = vmatprep.subr.mxu0 0.0
        %464 = vmatpush1.msra.mxu0 %v425
        %465 = vmatprep.subr.mxu0 0.0
        %466 = vmatpush1.msra.mxu0 %v424
        %467 = vmatprep.subr.mxu0 0.0
        %468 = vmatpush1.msra.mxu0 %v423
        %469 = vmatprep.subr.mxu0 0.0
        %470 = vmatpush1.msra.mxu0 %v422
        %471 = vmatprep.subr.mxu0 0.0
        %472 = vmatpush1.msra.mxu0 %v421
        %473 = vmatprep.subr.mxu0 0.0
        %474 = vmatpush1.msra.mxu0 %v420
        %475 = vmatprep.subr.mxu0 0.0
        %476 = vmatpush2.msra.mxu0 0.0
        %477 = vmatprep.subr.mxu0 0.0
        %478 = vmatpush2.msra.mxu0 0.0
        %479 = vmatprep.subr.mxu0 0.0
        %480 = vmatpush2.msra.mxu0 0.0
        %481 = vmatprep.subr.mxu0 0.0
        %482 = vmatpush2.msra.mxu0 0.0
        %483 = vmatprep.subr.mxu0 0.0
        %484 = vmatpush2.msra.mxu0 0.0
        %485 = vmatprep.subr.mxu0 0.0
        %486 = vmatpush2.msra.mxu0 0.0
        %487 = vmatprep.subr.mxu0 0.0
        %488 = vmatpush2.msra.mxu0 0.0
        %489 = vmatprep.subr.mxu0 0.0
        %490 = vmatpush2.msra.mxu0 0.0
        %491 = vmatprep.subr.mxu0 0.0
        %492 = vmatpush2.msra.mxu0 0.0
        %493 = vmatprep.subr.mxu0 0.0
        %494 = vmatpush2.msra.mxu0 0.0
        %495 = vmatprep.subr.mxu0 0.0
        %496 = vmatpush2.msra.mxu0 0.0
        %497 = vmatprep.subr.mxu0 0.0
        %498 = vmatpush2.msra.mxu0 0.0
        %499 = vmatprep.subr.mxu0 0.0
        %500 = vmatpush2.msra.mxu0 0.0
        %501 = vmatprep.subr.mxu0 0.0
        %502 = vmatpush2.msra.mxu0 0.0
        %503 = vmatprep.subr.mxu0 0.0
        %504 = vmatpush2.msra.mxu0 0.0
        %505 = vmatprep.subr.mxu0 0.0
        %506 = vmatpush2.msra.mxu0 0.0
        %507 = vmatprep.mubr.f32.mxu0 0.0
        %508 = vmatmul.mubr.f32.gmra.mxu0 %v372
        %v509 = vpop.f32.mrf.mxu0
        %v510 = vadd.f32 %v441, %v509
        %v511 = vpop.f32.mrf.mxu0
        %512 = vmatprep.mubr.f32.mxu0 0.0
        %513 = vmatmul.mubr.f32.gmra.mxu0 %v373
        %v514 = vpop.f32.mrf.mxu0
        %v515 = vadd.f32 %v441, %v514
        %v516 = vpop.f32.mrf.mxu0
        %517 = vmatprep.mubr.f32.mxu0 0.0
        %518 = vmatmul.mubr.f32.gmra.mxu0 %v374
        %v519 = vpop.f32.mrf.mxu0
        %v520 = vadd.f32 %v441, %v519
        %v521 = vpop.f32.mrf.mxu0
        %522 = vmatprep.mubr.f32.mxu0 0.0
        %523 = vmatmul.mubr.f32.gmra.mxu0 %v375
        %v524 = vpop.f32.mrf.mxu0
        %v525 = vadd.f32 %v441, %v524
        %v526 = vpop.f32.mrf.mxu0
        %527 = vmatprep.mubr.f32.mxu0 0.0
        %528 = vmatmul.mubr.f32.gmra.mxu0 %v376
        %v529 = vpop.f32.mrf.mxu0
        %v530 = vadd.f32 %v441, %v529
        %v531 = vpop.f32.mrf.mxu0
        %532 = vmatprep.mubr.f32.mxu0 0.0
        %533 = vmatmul.mubr.f32.gmra.mxu0 %v377
        %v534 = vpop.f32.mrf.mxu0
        %v535 = vadd.f32 %v441, %v534
        %v536 = vpop.f32.mrf.mxu0
        %537 = vmatprep.mubr.f32.mxu0 0.0
        %538 = vmatmul.mubr.f32.gmra.mxu0 %v378
        %v539 = vpop.f32.mrf.mxu0
        %v540 = vadd.f32 %v441, %v539
        %v541 = vpop.f32.mrf.mxu0
        %542 = vmatprep.mubr.f32.mxu0 0.0
        %543 = vmatmul.mubr.f32.gmra.mxu0 %v379
        %v544 = vpop.f32.mrf.mxu0
        %v545 = vadd.f32 %v441, %v544
        %v546 = vpop.f32.mrf.mxu0
        %547 = vmatprep.mubr.f32.mxu0 0.0
        %548 = vmatmul.mubr.f32.gmra.mxu0 %v380
        %v549 = vpop.f32.mrf.mxu0
        %v550 = vadd.f32 %v441, %v549
        %v551 = vpop.f32.mrf.mxu0
        %552 = vmatprep.mubr.f32.mxu0 0.0
        %553 = vmatmul.mubr.f32.gmra.mxu0 %v381
        %v554 = vpop.f32.mrf.mxu0
        %v555 = vadd.f32 %v441, %v554
        %v556 = vpop.f32.mrf.mxu0
        %557 = vmatprep.mubr.f32.mxu0 0.0
        %558 = vmatmul.mubr.f32.gmra.mxu0 %v382
        %v559 = vpop.f32.mrf.mxu0
        %v560 = vadd.f32 %v441, %v559
        %v561 = vpop.f32.mrf.mxu0
        %562 = vmatprep.mubr.f32.mxu0 0.0
        %563 = vmatmul.mubr.f32.gmra.mxu0 %v383
        %v564 = vpop.f32.mrf.mxu0
        %v565 = vadd.f32 %v441, %v564
        %v566 = vpop.f32.mrf.mxu0
        %567 = vmatprep.mubr.f32.mxu0 0.0
        %568 = vmatmul.mubr.f32.gmra.mxu0 %v384
        %v569 = vpop.f32.mrf.mxu0
        %v570 = vadd.f32 %v441, %v569
        %v571 = vpop.f32.mrf.mxu0
        %572 = vmatprep.mubr.f32.mxu0 0.0
        %573 = vmatmul.mubr.f32.gmra.mxu0 %v385
        %v574 = vpop.f32.mrf.mxu0
        %v575 = vadd.f32 %v441, %v574
        %v576 = vpop.f32.mrf.mxu0
        %577 = vmatprep.mubr.f32.mxu0 0.0
        %578 = vmatmul.mubr.f32.gmra.mxu0 %v386
        %v579 = vpop.f32.mrf.mxu0
        %v580 = vadd.f32 %v441, %v579
        %v581 = vpop.f32.mrf.mxu0
        %582 = vmatprep.mubr.f32.mxu0 0.0
        %583 = vmatmul.mubr.f32.gmra.mxu0 %v387
        %v584 = vpop.f32.mrf.mxu0
        %v585 = vadd.f32 %v441, %v584
        %v586 = vpop.f32.mrf.mxu0
        %587 = vmatprep.mubr.f32.mxu0 0.0
        %588 = vmatmul.mubr.f32.gmra.mxu0 %v404
        %v589 = vpop.f32.mrf.mxu0
        %v590 = vadd.f32 %v441, %v589
        %v591 = vpop.f32.mrf.mxu0
        %592 = vmatprep.mubr.f32.mxu0 0.0
        %593 = vmatmul.mubr.f32.gmra.mxu0 %v405
        %v594 = vpop.f32.mrf.mxu0
        %v595 = vadd.f32 %v441, %v594
        %v596 = vpop.f32.mrf.mxu0
        %597 = vmatprep.mubr.f32.mxu0 0.0
        %598 = vmatmul.mubr.f32.gmra.mxu0 %v406
        %v599 = vpop.f32.mrf.mxu0
        %v600 = vadd.f32 %v441, %v599
        %v601 = vpop.f32.mrf.mxu0
        %602 = vmatprep.mubr.f32.mxu0 0.0
        %603 = vmatmul.mubr.f32.gmra.mxu0 %v407
        %v604 = vpop.f32.mrf.mxu0
        %v605 = vadd.f32 %v441, %v604
        %v606 = vpop.f32.mrf.mxu0
        %607 = vmatprep.mubr.f32.mxu0 0.0
        %608 = vmatmul.mubr.f32.gmra.mxu0 %v408
        %v609 = vpop.f32.mrf.mxu0
        %v610 = vadd.f32 %v441, %v609
        %v611 = vpop.f32.mrf.mxu0
        %612 = vmatprep.mubr.f32.mxu0 0.0
        %613 = vmatmul.mubr.f32.gmra.mxu0 %v409
        %v614 = vpop.f32.mrf.mxu0
        %v615 = vadd.f32 %v441, %v614
        %v616 = vpop.f32.mrf.mxu0
        %617 = vmatprep.mubr.f32.mxu0 0.0
        %618 = vmatmul.mubr.f32.gmra.mxu0 %v410
        %v619 = vpop.f32.mrf.mxu0
        %v620 = vadd.f32 %v441, %v619
        %v621 = vpop.f32.mrf.mxu0
        %622 = vmatprep.mubr.f32.mxu0 0.0
        %623 = vmatmul.mubr.f32.gmra.mxu0 %v411
        %v624 = vpop.f32.mrf.mxu0
        %v625 = vadd.f32 %v441, %v624
        %v626 = vpop.f32.mrf.mxu0
        %627 = vmatprep.mubr.f32.mxu0 0.0
        %628 = vmatmul.mubr.f32.gmra.mxu0 %v412
        %v629 = vpop.f32.mrf.mxu0
        %v630 = vadd.f32 %v441, %v629
        %v631 = vpop.f32.mrf.mxu0
        %632 = vmatprep.mubr.f32.mxu0 0.0
        %633 = vmatmul.mubr.f32.gmra.mxu0 %v413
        %v634 = vpop.f32.mrf.mxu0
        %v635 = vadd.f32 %v441, %v634
        %v636 = vpop.f32.mrf.mxu0
        %637 = vmatprep.mubr.f32.mxu0 0.0
        %638 = vmatmul.mubr.f32.gmra.mxu0 %v414
        %v639 = vpop.f32.mrf.mxu0
        %v640 = vadd.f32 %v441, %v639
        %v641 = vpop.f32.mrf.mxu0
        %642 = vmatprep.mubr.f32.mxu0 0.0
        %643 = vmatmul.mubr.f32.gmra.mxu0 %v415
        %v644 = vpop.f32.mrf.mxu0
        %v645 = vadd.f32 %v441, %v644
        %v646 = vpop.f32.mrf.mxu0
        %647 = vmatprep.mubr.f32.mxu0 0.0
        %648 = vmatmul.mubr.f32.gmra.mxu0 %v416
        %v649 = vpop.f32.mrf.mxu0
        %v650 = vadd.f32 %v441, %v649
        %v651 = vpop.f32.mrf.mxu0
        %652 = vmatprep.mubr.f32.mxu0 0.0
        %653 = vmatmul.mubr.f32.gmra.mxu0 %v417
        %v654 = vpop.f32.mrf.mxu0
        %v655 = vadd.f32 %v441, %v654
        %v656 = vpop.f32.mrf.mxu0
        %657 = vmatprep.mubr.f32.mxu0 0.0
        %658 = vmatmul.mubr.f32.gmra.mxu0 %v418
        %v659 = vpop.f32.mrf.mxu0
        %v660 = vadd.f32 %v441, %v659
        %v661 = vpop.f32.mrf.mxu0
        %662 = vmatprep.mubr.f32.mxu0 0.0
        %663 = vmatmul.mubr.f32.gmra.mxu0 %v419
        %v664 = vpop.f32.mrf.mxu0
        %v665 = vadd.f32 %v441, %v664
        %v666 = vpop.f32.mrf.mxu0
        %667 = vdwg.mxu0
        %v668 = vld [vmem:[%s3] sm:$0xff]
        %v669 = vld [vmem:[%s3 + $0x8] sm:$0xff]
        %v670 = vld [vmem:[%s3 + $0x10] sm:$0xff]
        %v671 = vld [vmem:[%s3 + $0x18] sm:$0xff]
        %v672 = vld [vmem:[%s3 + $0x20] sm:$0xff]
        %v673 = vld [vmem:[%s3 + $0x28] sm:$0xff]
        %v674 = vld [vmem:[%s3 + $0x30] sm:$0xff]
        %v675 = vld [vmem:[%s3 + $0x38] sm:$0xff]
        %v676 = vld [vmem:[%s3 + $0x40] sm:$0xff]
        %v677 = vld [vmem:[%s3 + $0x48] sm:$0xff]
        %v678 = vld [vmem:[%s3 + $0x50] sm:$0xff]
        %v679 = vld [vmem:[%s3 + $0x58] sm:$0xff]
        %v680 = vld [vmem:[%s3 + $0x60] sm:$0xff]
        %v681 = vld [vmem:[%s3 + $0x68] sm:$0xff]
        %v682 = vld [vmem:[%s3 + $0x70] sm:$0xff]
        %v683 = vld [vmem:[%s3 + $0x78] sm:$0xff]
        %v684 = vld [vmem:[%s4] sm:$0x1]
        %v686 = vlaneseq
        %v687 = vshrl.u32 %v686, 7
        %v688 = vsub.s32 0, %v687
        %v689 = vrot.slane %v684, %v688
        %691 = vmatprep.subr.mxu0 0.0
        %692 = vmatpush1.msra.mxu0 %v683
        %693 = vmatprep.subr.mxu0 0.0
        %694 = vmatpush1.msra.mxu0 %v682
        %695 = vmatprep.subr.mxu0 0.0
        %696 = vmatpush1.msra.mxu0 %v681
        %697 = vmatprep.subr.mxu0 0.0
        %698 = vmatpush1.msra.mxu0 %v680
        %699 = vmatprep.subr.mxu0 0.0
        %700 = vmatpush1.msra.mxu0 %v679
        %701 = vmatprep.subr.mxu0 0.0
        %702 = vmatpush1.msra.mxu0 %v678
        %703 = vmatprep.subr.mxu0 0.0
        %704 = vmatpush1.msra.mxu0 %v677
        %705 = vmatprep.subr.mxu0 0.0
        %706 = vmatpush1.msra.mxu0 %v676
        %707 = vmatprep.subr.mxu0 0.0
        %708 = vmatpush1.msra.mxu0 %v675
        %709 = vmatprep.subr.mxu0 0.0
        %710 = vmatpush1.msra.mxu0 %v674
        %711 = vmatprep.subr.mxu0 0.0
        %712 = vmatpush1.msra.mxu0 %v673
        %713 = vmatprep.subr.mxu0 0.0
        %714 = vmatpush1.msra.mxu0 %v672
        %715 = vmatprep.subr.mxu0 0.0
        %716 = vmatpush1.msra.mxu0 %v671
        %717 = vmatprep.subr.mxu0 0.0
        %718 = vmatpush1.msra.mxu0 %v670
        %719 = vmatprep.subr.mxu0 0.0
        %720 = vmatpush1.msra.mxu0 %v669
        %721 = vmatprep.subr.mxu0 0.0
        %722 = vmatpush1.msra.mxu0 %v668
        %723 = vmatprep.subr.mxu0 0.0
        %724 = vmatpush2.msra.mxu0 0.0
        %725 = vmatprep.subr.mxu0 0.0
        %726 = vmatpush2.msra.mxu0 0.0
        %727 = vmatprep.subr.mxu0 0.0
        %728 = vmatpush2.msra.mxu0 0.0
        %729 = vmatprep.subr.mxu0 0.0
        %730 = vmatpush2.msra.mxu0 0.0
        %731 = vmatprep.subr.mxu0 0.0
        %732 = vmatpush2.msra.mxu0 0.0
        %733 = vmatprep.subr.mxu0 0.0
        %734 = vmatpush2.msra.mxu0 0.0
        %735 = vmatprep.subr.mxu0 0.0
        %736 = vmatpush2.msra.mxu0 0.0
        %737 = vmatprep.subr.mxu0 0.0
        %738 = vmatpush2.msra.mxu0 0.0
        %739 = vmatprep.subr.mxu0 0.0
        %740 = vmatpush2.msra.mxu0 0.0
        %741 = vmatprep.subr.mxu0 0.0
        %742 = vmatpush2.msra.mxu0 0.0
        %743 = vmatprep.subr.mxu0 0.0
        %744 = vmatpush2.msra.mxu0 0.0
        %745 = vmatprep.subr.mxu0 0.0
        %746 = vmatpush2.msra.mxu0 0.0
        %747 = vmatprep.subr.mxu0 0.0
        %748 = vmatpush2.msra.mxu0 0.0
        %749 = vmatprep.subr.mxu0 0.0
        %750 = vmatpush2.msra.mxu0 0.0
        %751 = vmatprep.subr.mxu0 0.0
        %752 = vmatpush2.msra.mxu0 0.0
        %753 = vmatprep.subr.mxu0 0.0
        %754 = vmatpush2.msra.mxu0 0.0
        %755 = vmatprep.mubr.f32.mxu0 0.0
        %756 = vmatmul.mubr.f32.gmra.mxu0 %v372
        %v757 = vpop.f32.mrf.mxu0
        %v758 = vadd.f32 %v689, %v757
        %v759 = vpop.f32.mrf.mxu0
        %760 = vmatprep.mubr.f32.mxu0 0.0
        %761 = vmatmul.mubr.f32.gmra.mxu0 %v373
        %v762 = vpop.f32.mrf.mxu0
        %v763 = vadd.f32 %v689, %v762
        %v764 = vpop.f32.mrf.mxu0
        %765 = vmatprep.mubr.f32.mxu0 0.0
        %766 = vmatmul.mubr.f32.gmra.mxu0 %v374
        %v767 = vpop.f32.mrf.mxu0
        %v768 = vadd.f32 %v689, %v767
        %v769 = vpop.f32.mrf.mxu0
        %770 = vmatprep.mubr.f32.mxu0 0.0
        %771 = vmatmul.mubr.f32.gmra.mxu0 %v375
        %v772 = vpop.f32.mrf.mxu0
        %v773 = vadd.f32 %v689, %v772
        %v774 = vpop.f32.mrf.mxu0
        %775 = vmatprep.mubr.f32.mxu0 0.0
        %776 = vmatmul.mubr.f32.gmra.mxu0 %v376
        %v777 = vpop.f32.mrf.mxu0
        %v778 = vadd.f32 %v689, %v777
        %v779 = vpop.f32.mrf.mxu0
        %780 = vmatprep.mubr.f32.mxu0 0.0
        %781 = vmatmul.mubr.f32.gmra.mxu0 %v377
        %v782 = vpop.f32.mrf.mxu0
        %v783 = vadd.f32 %v689, %v782
        %v784 = vpop.f32.mrf.mxu0
        %785 = vmatprep.mubr.f32.mxu0 0.0
        %786 = vmatmul.mubr.f32.gmra.mxu0 %v378
        %v787 = vpop.f32.mrf.mxu0
        %v788 = vadd.f32 %v689, %v787
        %v789 = vpop.f32.mrf.mxu0
        %790 = vmatprep.mubr.f32.mxu0 0.0
        %791 = vmatmul.mubr.f32.gmra.mxu0 %v379
        %v792 = vpop.f32.mrf.mxu0
        %v793 = vadd.f32 %v689, %v792
        %v794 = vpop.f32.mrf.mxu0
        %795 = vmatprep.mubr.f32.mxu0 0.0
        %796 = vmatmul.mubr.f32.gmra.mxu0 %v380
        %v797 = vpop.f32.mrf.mxu0
        %v798 = vadd.f32 %v689, %v797
        %v799 = vpop.f32.mrf.mxu0
        %800 = vmatprep.mubr.f32.mxu0 0.0
        %801 = vmatmul.mubr.f32.gmra.mxu0 %v381
        %v802 = vpop.f32.mrf.mxu0
        %v803 = vadd.f32 %v689, %v802
        %v804 = vpop.f32.mrf.mxu0
        %805 = vmatprep.mubr.f32.mxu0 0.0
        %806 = vmatmul.mubr.f32.gmra.mxu0 %v382
        %v807 = vpop.f32.mrf.mxu0
        %v808 = vadd.f32 %v689, %v807
        %v809 = vpop.f32.mrf.mxu0
        %810 = vmatprep.mubr.f32.mxu0 0.0
        %811 = vmatmul.mubr.f32.gmra.mxu0 %v383
        %v812 = vpop.f32.mrf.mxu0
        %v813 = vadd.f32 %v689, %v812
        %v814 = vpop.f32.mrf.mxu0
        %815 = vmatprep.mubr.f32.mxu0 0.0
        %816 = vmatmul.mubr.f32.gmra.mxu0 %v384
        %v817 = vpop.f32.mrf.mxu0
        %v818 = vadd.f32 %v689, %v817
        %v819 = vpop.f32.mrf.mxu0
        %820 = vmatprep.mubr.f32.mxu0 0.0
        %821 = vmatmul.mubr.f32.gmra.mxu0 %v385
        %v822 = vpop.f32.mrf.mxu0
        %v823 = vadd.f32 %v689, %v822
        %v824 = vpop.f32.mrf.mxu0
        %825 = vmatprep.mubr.f32.mxu0 0.0
        %826 = vmatmul.mubr.f32.gmra.mxu0 %v386
        %v827 = vpop.f32.mrf.mxu0
        %v828 = vadd.f32 %v689, %v827
        %v829 = vpop.f32.mrf.mxu0
        %830 = vmatprep.mubr.f32.mxu0 0.0
        %831 = vmatmul.mubr.f32.gmra.mxu0 %v387
        %v832 = vpop.f32.mrf.mxu0
        %v833 = vadd.f32 %v689, %v832
        %v834 = vpop.f32.mrf.mxu0
        %835 = vmatprep.mubr.f32.mxu0 0.0
        %836 = vmatmul.mubr.f32.gmra.mxu0 %v404
        %v837 = vpop.f32.mrf.mxu0
        %v838 = vadd.f32 %v689, %v837
        %v839 = vpop.f32.mrf.mxu0
        %840 = vmatprep.mubr.f32.mxu0 0.0
        %841 = vmatmul.mubr.f32.gmra.mxu0 %v405
        %v842 = vpop.f32.mrf.mxu0
        %v843 = vadd.f32 %v689, %v842
        %v844 = vpop.f32.mrf.mxu0
        %845 = vmatprep.mubr.f32.mxu0 0.0
        %846 = vmatmul.mubr.f32.gmra.mxu0 %v406
        %v847 = vpop.f32.mrf.mxu0
        %v848 = vadd.f32 %v689, %v847
        %v849 = vpop.f32.mrf.mxu0
        %850 = vmatprep.mubr.f32.mxu0 0.0
        %851 = vmatmul.mubr.f32.gmra.mxu0 %v407
        %v852 = vpop.f32.mrf.mxu0
        %v853 = vadd.f32 %v689, %v852
        %v854 = vpop.f32.mrf.mxu0
        %855 = vmatprep.mubr.f32.mxu0 0.0
        %856 = vmatmul.mubr.f32.gmra.mxu0 %v408
        %v857 = vpop.f32.mrf.mxu0
        %v858 = vadd.f32 %v689, %v857
        %v859 = vpop.f32.mrf.mxu0
        %860 = vmatprep.mubr.f32.mxu0 0.0
        %861 = vmatmul.mubr.f32.gmra.mxu0 %v409
        %v862 = vpop.f32.mrf.mxu0
        %v863 = vadd.f32 %v689, %v862
        %v864 = vpop.f32.mrf.mxu0
        %865 = vmatprep.mubr.f32.mxu0 0.0
        %866 = vmatmul.mubr.f32.gmra.mxu0 %v410
        %v867 = vpop.f32.mrf.mxu0
        %v868 = vadd.f32 %v689, %v867
        %v869 = vpop.f32.mrf.mxu0
        %870 = vmatprep.mubr.f32.mxu0 0.0
        %871 = vmatmul.mubr.f32.gmra.mxu0 %v411
        %v872 = vpop.f32.mrf.mxu0
        %v873 = vadd.f32 %v689, %v872
        %v874 = vpop.f32.mrf.mxu0
        %875 = vmatprep.mubr.f32.mxu0 0.0
        %876 = vmatmul.mubr.f32.gmra.mxu0 %v412
        %v877 = vpop.f32.mrf.mxu0
        %v878 = vadd.f32 %v689, %v877
        %v879 = vpop.f32.mrf.mxu0
        %880 = vmatprep.mubr.f32.mxu0 0.0
        %881 = vmatmul.mubr.f32.gmra.mxu0 %v413
        %v882 = vpop.f32.mrf.mxu0
        %v883 = vadd.f32 %v689, %v882
        %v884 = vpop.f32.mrf.mxu0
        %885 = vmatprep.mubr.f32.mxu0 0.0
        %886 = vmatmul.mubr.f32.gmra.mxu0 %v414
        %v887 = vpop.f32.mrf.mxu0
        %v888 = vadd.f32 %v689, %v887
        %v889 = vpop.f32.mrf.mxu0
        %890 = vmatprep.mubr.f32.mxu0 0.0
        %891 = vmatmul.mubr.f32.gmra.mxu0 %v415
        %v892 = vpop.f32.mrf.mxu0
        %v893 = vadd.f32 %v689, %v892
        %v894 = vpop.f32.mrf.mxu0
        %895 = vmatprep.mubr.f32.mxu0 0.0
        %896 = vmatmul.mubr.f32.gmra.mxu0 %v416
        %v897 = vpop.f32.mrf.mxu0
        %v898 = vadd.f32 %v689, %v897
        %v899 = vpop.f32.mrf.mxu0
        %900 = vmatprep.mubr.f32.mxu0 0.0
        %901 = vmatmul.mubr.f32.gmra.mxu0 %v417
        %v902 = vpop.f32.mrf.mxu0
        %v903 = vadd.f32 %v689, %v902
        %v904 = vpop.f32.mrf.mxu0
        %905 = vmatprep.mubr.f32.mxu0 0.0
        %906 = vmatmul.mubr.f32.gmra.mxu0 %v418
        %v907 = vpop.f32.mrf.mxu0
        %v908 = vadd.f32 %v689, %v907
        %v909 = vpop.f32.mrf.mxu0
        %910 = vmatprep.mubr.f32.mxu0 0.0
        %911 = vmatmul.mubr.f32.gmra.mxu0 %v419
        %v912 = vpop.f32.mrf.mxu0
        %v913 = vadd.f32 %v689, %v912
        %v914 = vpop.f32.mrf.mxu0
        %915 = vdwg.mxu0
        %v916 = vxor.u32 %v510, 2147483648
        %v917 = vxor.u32 %v515, 2147483648
        %v918 = vxor.u32 %v520, 2147483648
        %v919 = vxor.u32 %v525, 2147483648
        %v920 = vxor.u32 %v530, 2147483648
        %v921 = vxor.u32 %v535, 2147483648
        %v922 = vxor.u32 %v540, 2147483648
        %v923 = vxor.u32 %v545, 2147483648
        %v924 = vxor.u32 %v550, 2147483648
        %v925 = vxor.u32 %v555, 2147483648
        %v926 = vxor.u32 %v560, 2147483648
        %v927 = vxor.u32 %v565, 2147483648
        %v928 = vxor.u32 %v570, 2147483648
        %v929 = vxor.u32 %v575, 2147483648
        %v930 = vxor.u32 %v580, 2147483648
        %v931 = vxor.u32 %v585, 2147483648
        %v932 = vxor.u32 %v590, 2147483648
        %v933 = vxor.u32 %v595, 2147483648
        %v934 = vxor.u32 %v600, 2147483648
        %v935 = vxor.u32 %v605, 2147483648
        %v936 = vxor.u32 %v610, 2147483648
        %v937 = vxor.u32 %v615, 2147483648
        %v938 = vxor.u32 %v620, 2147483648
        %v939 = vxor.u32 %v625, 2147483648
        %v940 = vxor.u32 %v630, 2147483648
        %v941 = vxor.u32 %v635, 2147483648
        %v942 = vxor.u32 %v640, 2147483648
        %v943 = vxor.u32 %v645, 2147483648
        %v944 = vxor.u32 %v650, 2147483648
        %v945 = vxor.u32 %v655, 2147483648
        %v946 = vxor.u32 %v660, 2147483648
        %v947 = vxor.u32 %v665, 2147483648
        %v948 = vmul.f32 %v916, 1.442695
        %v949 = vpow.pop %v948
        %v950 = vmul.f32 %v917, 1.442695
        %v951 = vpow.pop %v950
        %v952 = vmul.f32 %v918, 1.442695
        %v953 = vpow.pop %v952
        %v954 = vmul.f32 %v919, 1.442695
        %v955 = vpow.pop %v954
        %v956 = vmul.f32 %v920, 1.442695
        %v957 = vpow.pop %v956
        %v958 = vmul.f32 %v921, 1.442695
        %v959 = vpow.pop %v958
        %v960 = vmul.f32 %v922, 1.442695
        %v961 = vpow.pop %v960
        %v962 = vmul.f32 %v923, 1.442695
        %v963 = vpow.pop %v962
        %v964 = vmul.f32 %v924, 1.442695
        %v965 = vpow.pop %v964
        %v966 = vmul.f32 %v925, 1.442695
        %v967 = vpow.pop %v966
        %v968 = vmul.f32 %v926, 1.442695
        %v969 = vpow.pop %v968
        %v970 = vmul.f32 %v927, 1.442695
        %v971 = vpow.pop %v970
        %v972 = vmul.f32 %v928, 1.442695
        %v973 = vpow.pop %v972
        %v974 = vmul.f32 %v929, 1.442695
        %v975 = vpow.pop %v974
        %v976 = vmul.f32 %v930, 1.442695
        %v977 = vpow.pop %v976
        %v978 = vmul.f32 %v931, 1.442695
        %v979 = vpow.pop %v978
        %v980 = vmul.f32 %v932, 1.442695
        %v981 = vpow.pop %v980
        %v982 = vmul.f32 %v933, 1.442695
        %v983 = vpow.pop %v982
        %v984 = vmul.f32 %v934, 1.442695
        %v985 = vpow.pop %v984
        %v986 = vmul.f32 %v935, 1.442695
        %v987 = vpow.pop %v986
        %v988 = vmul.f32 %v936, 1.442695
        %v989 = vpow.pop %v988
        %v990 = vmul.f32 %v937, 1.442695
        %v991 = vpow.pop %v990
        %v992 = vmul.f32 %v938, 1.442695
        %v993 = vpow.pop %v992
        %v994 = vmul.f32 %v939, 1.442695
        %v995 = vpow.pop %v994
        %v996 = vmul.f32 %v940, 1.442695
        %v997 = vpow.pop %v996
        %v998 = vmul.f32 %v941, 1.442695
        %v999 = vpow.pop %v998
        %v1000 = vmul.f32 %v942, 1.442695
        %v1001 = vpow.pop %v1000
        %v1002 = vmul.f32 %v943, 1.442695
        %v1003 = vpow.pop %v1002
        %v1004 = vmul.f32 %v944, 1.442695
        %v1005 = vpow.pop %v1004
        %v1006 = vmul.f32 %v945, 1.442695
        %v1007 = vpow.pop %v1006
        %v1008 = vmul.f32 %v946, 1.442695
        %v1009 = vpow.pop %v1008
        %v1010 = vmul.f32 %v947, 1.442695
        %v1011 = vpow.pop %v1010
        %v1012 = vadd.f32 %v949, 1.0
        %v1013 = vadd.f32 %v951, 1.0
        %v1014 = vadd.f32 %v953, 1.0
        %v1015 = vadd.f32 %v955, 1.0
        %v1016 = vadd.f32 %v957, 1.0
        %v1017 = vadd.f32 %v959, 1.0
        %v1018 = vadd.f32 %v961, 1.0
        %v1019 = vadd.f32 %v963, 1.0
        %v1020 = vadd.f32 %v965, 1.0
        %v1021 = vadd.f32 %v967, 1.0
        %v1022 = vadd.f32 %v969, 1.0
        %v1023 = vadd.f32 %v971, 1.0
        %v1024 = vadd.f32 %v973, 1.0
        %v1025 = vadd.f32 %v975, 1.0
        %v1026 = vadd.f32 %v977, 1.0
        %v1027 = vadd.f32 %v979, 1.0
        %v1028 = vadd.f32 %v981, 1.0
        %v1029 = vadd.f32 %v983, 1.0
        %v1030 = vadd.f32 %v985, 1.0
        %v1031 = vadd.f32 %v987, 1.0
        %v1032 = vadd.f32 %v989, 1.0
        %v1033 = vadd.f32 %v991, 1.0
        %v1034 = vadd.f32 %v993, 1.0
        %v1035 = vadd.f32 %v995, 1.0
        %v1036 = vadd.f32 %v997, 1.0
        %v1037 = vadd.f32 %v999, 1.0
        %v1038 = vadd.f32 %v1001, 1.0
        %v1039 = vadd.f32 %v1003, 1.0
        %v1040 = vadd.f32 %v1005, 1.0
        %v1041 = vadd.f32 %v1007, 1.0
        %v1042 = vadd.f32 %v1009, 1.0
        %v1043 = vadd.f32 %v1011, 1.0
        %v1044 = vrcp.pop %v1012
        %v1045 = vmul.f32 1.0, %v1044
        %v1046 = vrcp.pop %v1013
        %v1047 = vmul.f32 1.0, %v1046
        %v1048 = vrcp.pop %v1014
        %v1049 = vmul.f32 1.0, %v1048
        %v1050 = vrcp.pop %v1015
        %v1051 = vmul.f32 1.0, %v1050
        %v1052 = vrcp.pop %v1016
        %v1053 = vmul.f32 1.0, %v1052
        %v1054 = vrcp.pop %v1017
        %v1055 = vmul.f32 1.0, %v1054
        %v1056 = vrcp.pop %v1018
        %v1057 = vmul.f32 1.0, %v1056
        %v1058 = vrcp.pop %v1019
        %v1059 = vmul.f32 1.0, %v1058
        %v1060 = vrcp.pop %v1020
        %v1061 = vmul.f32 1.0, %v1060
        %v1062 = vrcp.pop %v1021
        %v1063 = vmul.f32 1.0, %v1062
        %v1064 = vrcp.pop %v1022
        %v1065 = vmul.f32 1.0, %v1064
        %v1066 = vrcp.pop %v1023
        %v1067 = vmul.f32 1.0, %v1066
        %v1068 = vrcp.pop %v1024
        %v1069 = vmul.f32 1.0, %v1068
        %v1070 = vrcp.pop %v1025
        %v1071 = vmul.f32 1.0, %v1070
        %v1072 = vrcp.pop %v1026
        %v1073 = vmul.f32 1.0, %v1072
        %v1074 = vrcp.pop %v1027
        %v1075 = vmul.f32 1.0, %v1074
        %v1076 = vrcp.pop %v1028
        %v1077 = vmul.f32 1.0, %v1076
        %v1078 = vrcp.pop %v1029
        %v1079 = vmul.f32 1.0, %v1078
        %v1080 = vrcp.pop %v1030
        %v1081 = vmul.f32 1.0, %v1080
        %v1082 = vrcp.pop %v1031
        %v1083 = vmul.f32 1.0, %v1082
        %v1084 = vrcp.pop %v1032
        %v1085 = vmul.f32 1.0, %v1084
        %v1086 = vrcp.pop %v1033
        %v1087 = vmul.f32 1.0, %v1086
        %v1088 = vrcp.pop %v1034
        %v1089 = vmul.f32 1.0, %v1088
        %v1090 = vrcp.pop %v1035
        %v1091 = vmul.f32 1.0, %v1090
        %v1092 = vrcp.pop %v1036
        %v1093 = vmul.f32 1.0, %v1092
        %v1094 = vrcp.pop %v1037
        %v1095 = vmul.f32 1.0, %v1094
        %v1096 = vrcp.pop %v1038
        %v1097 = vmul.f32 1.0, %v1096
        %v1098 = vrcp.pop %v1039
        %v1099 = vmul.f32 1.0, %v1098
        %v1100 = vrcp.pop %v1040
        %v1101 = vmul.f32 1.0, %v1100
        %v1102 = vrcp.pop %v1041
        %v1103 = vmul.f32 1.0, %v1102
        %v1104 = vrcp.pop %v1042
        %v1105 = vmul.f32 1.0, %v1104
        %v1106 = vrcp.pop %v1043
        %v1107 = vmul.f32 1.0, %v1106
        %v1108 = vmul.f32 %v510, %v1045
        %v1109 = vmul.f32 %v515, %v1047
        %v1110 = vmul.f32 %v520, %v1049
        %v1111 = vmul.f32 %v525, %v1051
        %v1112 = vmul.f32 %v530, %v1053
        %v1113 = vmul.f32 %v535, %v1055
        %v1114 = vmul.f32 %v540, %v1057
        %v1115 = vmul.f32 %v545, %v1059
        %v1116 = vmul.f32 %v550, %v1061
        %v1117 = vmul.f32 %v555, %v1063
        %v1118 = vmul.f32 %v560, %v1065
        %v1119 = vmul.f32 %v565, %v1067
        %v1120 = vmul.f32 %v570, %v1069
        %v1121 = vmul.f32 %v575, %v1071
        %v1122 = vmul.f32 %v580, %v1073
        %v1123 = vmul.f32 %v585, %v1075
        %v1124 = vmul.f32 %v590, %v1077
        %v1125 = vmul.f32 %v595, %v1079
        %v1126 = vmul.f32 %v600, %v1081
        %v1127 = vmul.f32 %v605, %v1083
        %v1128 = vmul.f32 %v610, %v1085
        %v1129 = vmul.f32 %v615, %v1087
        %v1130 = vmul.f32 %v620, %v1089
        %v1131 = vmul.f32 %v625, %v1091
        %v1132 = vmul.f32 %v630, %v1093
        %v1133 = vmul.f32 %v635, %v1095
        %v1134 = vmul.f32 %v640, %v1097
        %v1135 = vmul.f32 %v645, %v1099
        %v1136 = vmul.f32 %v650, %v1101
        %v1137 = vmul.f32 %v655, %v1103
        %v1138 = vmul.f32 %v660, %v1105
        %v1139 = vmul.f32 %v665, %v1107
        %vm1140 = vcmask 523264
        %1141 = vst.msk [vmem:[%s312] sm:$0xff] %vm1140, %v1108
        %1142 = vst.msk [vmem:[%s312 + $0x8] sm:$0xff] %vm1140, %v1109
        %1143 = vst.msk [vmem:[%s312 + $0x10] sm:$0xff] %vm1140, %v1110
        %1144 = vst.msk [vmem:[%s312 + $0x18] sm:$0xff] %vm1140, %v1111
        %1145 = vst.msk [vmem:[%s312 + $0x20] sm:$0xff] %vm1140, %v1112
        %1146 = vst.msk [vmem:[%s312 + $0x28] sm:$0xff] %vm1140, %v1113
        %1147 = vst.msk [vmem:[%s312 + $0x30] sm:$0xff] %vm1140, %v1114
        %1148 = vst.msk [vmem:[%s312 + $0x38] sm:$0xff] %vm1140, %v1115
        %1149 = vst.msk [vmem:[%s312 + $0x40] sm:$0xff] %vm1140, %v1116
        %1150 = vst.msk [vmem:[%s312 + $0x48] sm:$0xff] %vm1140, %v1117
        %1151 = vst.msk [vmem:[%s312 + $0x50] sm:$0xff] %vm1140, %v1118
        %1152 = vst.msk [vmem:[%s312 + $0x58] sm:$0xff] %vm1140, %v1119
        %1153 = vst.msk [vmem:[%s312 + $0x60] sm:$0xff] %vm1140, %v1120
        %1154 = vst.msk [vmem:[%s312 + $0x68] sm:$0xff] %vm1140, %v1121
        %1155 = vst.msk [vmem:[%s312 + $0x70] sm:$0xff] %vm1140, %v1122
        %1156 = vst.msk [vmem:[%s312 + $0x78] sm:$0xff] %vm1140, %v1123
        %1157 = vst.msk [vmem:[%s312 + $0x80] sm:$0xff] %vm1140, %v1124
        %1158 = vst.msk [vmem:[%s312 + $0x88] sm:$0xff] %vm1140, %v1125
        %1159 = vst.msk [vmem:[%s312 + $0x90] sm:$0xff] %vm1140, %v1126
        %1160 = vst.msk [vmem:[%s312 + $0x98] sm:$0xff] %vm1140, %v1127
        %1161 = vst.msk [vmem:[%s312 + $0xa0] sm:$0xff] %vm1140, %v1128
        %1162 = vst.msk [vmem:[%s312 + $0xa8] sm:$0xff] %vm1140, %v1129
        %1163 = vst.msk [vmem:[%s312 + $0xb0] sm:$0xff] %vm1140, %v1130
        %1164 = vst.msk [vmem:[%s312 + $0xb8] sm:$0xff] %vm1140, %v1131
        %1165 = vst.msk [vmem:[%s312 + $0xc0] sm:$0xff] %vm1140, %v1132
        %1166 = vst.msk [vmem:[%s312 + $0xc8] sm:$0xff] %vm1140, %v1133
        %1167 = vst.msk [vmem:[%s312 + $0xd0] sm:$0xff] %vm1140, %v1134
        %1168 = vst.msk [vmem:[%s312 + $0xd8] sm:$0xff] %vm1140, %v1135
        %1169 = vst.msk [vmem:[%s312 + $0xe0] sm:$0xff] %vm1140, %v1136
        %1170 = vst.msk [vmem:[%s312 + $0xe8] sm:$0xff] %vm1140, %v1137
        %1171 = vst.msk [vmem:[%s312 + $0xf0] sm:$0xff] %vm1140, %v1138
        %1172 = vst.msk [vmem:[%s312 + $0xf8] sm:$0xff] %vm1140, %v1139
        %v1173 = vxor.u32 %v758, 2147483648
        %v1174 = vxor.u32 %v763, 2147483648
        %v1175 = vxor.u32 %v768, 2147483648
        %v1176 = vxor.u32 %v773, 2147483648
        %v1177 = vxor.u32 %v778, 2147483648
        %v1178 = vxor.u32 %v783, 2147483648
        %v1179 = vxor.u32 %v788, 2147483648
        %v1180 = vxor.u32 %v793, 2147483648
        %v1181 = vxor.u32 %v798, 2147483648
        %v1182 = vxor.u32 %v803, 2147483648
        %v1183 = vxor.u32 %v808, 2147483648
        %v1184 = vxor.u32 %v813, 2147483648
        %v1185 = vxor.u32 %v818, 2147483648
        %v1186 = vxor.u32 %v823, 2147483648
        %v1187 = vxor.u32 %v828, 2147483648
        %v1188 = vxor.u32 %v833, 2147483648
        %v1189 = vxor.u32 %v838, 2147483648
        %v1190 = vxor.u32 %v843, 2147483648
        %v1191 = vxor.u32 %v848, 2147483648
        %v1192 = vxor.u32 %v853, 2147483648
        %v1193 = vxor.u32 %v858, 2147483648
        %v1194 = vxor.u32 %v863, 2147483648
        %v1195 = vxor.u32 %v868, 2147483648
        %v1196 = vxor.u32 %v873, 2147483648
        %v1197 = vxor.u32 %v878, 2147483648
        %v1198 = vxor.u32 %v883, 2147483648
        %v1199 = vxor.u32 %v888, 2147483648
        %v1200 = vxor.u32 %v893, 2147483648
        %v1201 = vxor.u32 %v898, 2147483648
        %v1202 = vxor.u32 %v903, 2147483648
        %v1203 = vxor.u32 %v908, 2147483648
        %v1204 = vxor.u32 %v913, 2147483648
        %v1205 = vmul.f32 %v1173, 1.442695
        %v1206 = vpow.pop %v1205
        %v1207 = vmul.f32 %v1174, 1.442695
        %v1208 = vpow.pop %v1207
        %v1209 = vmul.f32 %v1175, 1.442695
        %v1210 = vpow.pop %v1209
        %v1211 = vmul.f32 %v1176, 1.442695
        %v1212 = vpow.pop %v1211
        %v1213 = vmul.f32 %v1177, 1.442695
        %v1214 = vpow.pop %v1213
        %v1215 = vmul.f32 %v1178, 1.442695
        %v1216 = vpow.pop %v1215
        %v1217 = vmul.f32 %v1179, 1.442695
        %v1218 = vpow.pop %v1217
        %v1219 = vmul.f32 %v1180, 1.442695
        %v1220 = vpow.pop %v1219
        %v1221 = vmul.f32 %v1181, 1.442695
        %v1222 = vpow.pop %v1221
        %v1223 = vmul.f32 %v1182, 1.442695
        %v1224 = vpow.pop %v1223
        %v1225 = vmul.f32 %v1183, 1.442695
        %v1226 = vpow.pop %v1225
        %v1227 = vmul.f32 %v1184, 1.442695
        %v1228 = vpow.pop %v1227
        %v1229 = vmul.f32 %v1185, 1.442695
        %v1230 = vpow.pop %v1229
        %v1231 = vmul.f32 %v1186, 1.442695
        %v1232 = vpow.pop %v1231
        %v1233 = vmul.f32 %v1187, 1.442695
        %v1234 = vpow.pop %v1233
        %v1235 = vmul.f32 %v1188, 1.442695
        %v1236 = vpow.pop %v1235
        %v1237 = vmul.f32 %v1189, 1.442695
        %v1238 = vpow.pop %v1237
        %v1239 = vmul.f32 %v1190, 1.442695
        %v1240 = vpow.pop %v1239
        %v1241 = vmul.f32 %v1191, 1.442695
        %v1242 = vpow.pop %v1241
        %v1243 = vmul.f32 %v1192, 1.442695
        %v1244 = vpow.pop %v1243
        %v1245 = vmul.f32 %v1193, 1.442695
        %v1246 = vpow.pop %v1245
        %v1247 = vmul.f32 %v1194, 1.442695
        %v1248 = vpow.pop %v1247
        %v1249 = vmul.f32 %v1195, 1.442695
        %v1250 = vpow.pop %v1249
        %v1251 = vmul.f32 %v1196, 1.442695
        %v1252 = vpow.pop %v1251
        %v1253 = vmul.f32 %v1197, 1.442695
        %v1254 = vpow.pop %v1253
        %v1255 = vmul.f32 %v1198, 1.442695
        %v1256 = vpow.pop %v1255
        %v1257 = vmul.f32 %v1199, 1.442695
        %v1258 = vpow.pop %v1257
        %v1259 = vmul.f32 %v1200, 1.442695
        %v1260 = vpow.pop %v1259
        %v1261 = vmul.f32 %v1201, 1.442695
        %v1262 = vpow.pop %v1261
        %v1263 = vmul.f32 %v1202, 1.442695
        %v1264 = vpow.pop %v1263
        %v1265 = vmul.f32 %v1203, 1.442695
        %v1266 = vpow.pop %v1265
        %v1267 = vmul.f32 %v1204, 1.442695
        %v1268 = vpow.pop %v1267
        %v1269 = vadd.f32 %v1206, 1.0
        %v1270 = vadd.f32 %v1208, 1.0
        %v1271 = vadd.f32 %v1210, 1.0
        %v1272 = vadd.f32 %v1212, 1.0
        %v1273 = vadd.f32 %v1214, 1.0
        %v1274 = vadd.f32 %v1216, 1.0
        %v1275 = vadd.f32 %v1218, 1.0
        %v1276 = vadd.f32 %v1220, 1.0
        %v1277 = vadd.f32 %v1222, 1.0
        %v1278 = vadd.f32 %v1224, 1.0
        %v1279 = vadd.f32 %v1226, 1.0
        %v1280 = vadd.f32 %v1228, 1.0
        %v1281 = vadd.f32 %v1230, 1.0
        %v1282 = vadd.f32 %v1232, 1.0
        %v1283 = vadd.f32 %v1234, 1.0
        %v1284 = vadd.f32 %v1236, 1.0
        %v1285 = vadd.f32 %v1238, 1.0
        %v1286 = vadd.f32 %v1240, 1.0
        %v1287 = vadd.f32 %v1242, 1.0
        %v1288 = vadd.f32 %v1244, 1.0
        %v1289 = vadd.f32 %v1246, 1.0
        %v1290 = vadd.f32 %v1248, 1.0
        %v1291 = vadd.f32 %v1250, 1.0
        %v1292 = vadd.f32 %v1252, 1.0
        %v1293 = vadd.f32 %v1254, 1.0
        %v1294 = vadd.f32 %v1256, 1.0
        %v1295 = vadd.f32 %v1258, 1.0
        %v1296 = vadd.f32 %v1260, 1.0
        %v1297 = vadd.f32 %v1262, 1.0
        %v1298 = vadd.f32 %v1264, 1.0
        %v1299 = vadd.f32 %v1266, 1.0
        %v1300 = vadd.f32 %v1268, 1.0
        %v1301 = vrcp.pop %v1269
        %v1302 = vmul.f32 1.0, %v1301
        %v1303 = vrcp.pop %v1270
        %v1304 = vmul.f32 1.0, %v1303
        %v1305 = vrcp.pop %v1271
        %v1306 = vmul.f32 1.0, %v1305
        %v1307 = vrcp.pop %v1272
        %v1308 = vmul.f32 1.0, %v1307
        %v1309 = vrcp.pop %v1273
        %v1310 = vmul.f32 1.0, %v1309
        %v1311 = vrcp.pop %v1274
        %v1312 = vmul.f32 1.0, %v1311
        %v1313 = vrcp.pop %v1275
        %v1314 = vmul.f32 1.0, %v1313
        %v1315 = vrcp.pop %v1276
        %v1316 = vmul.f32 1.0, %v1315
        %v1317 = vrcp.pop %v1277
        %v1318 = vmul.f32 1.0, %v1317
        %v1319 = vrcp.pop %v1278
        %v1320 = vmul.f32 1.0, %v1319
        %v1321 = vrcp.pop %v1279
        %v1322 = vmul.f32 1.0, %v1321
        %v1323 = vrcp.pop %v1280
        %v1324 = vmul.f32 1.0, %v1323
        %v1325 = vrcp.pop %v1281
        %v1326 = vmul.f32 1.0, %v1325
        %v1327 = vrcp.pop %v1282
        %v1328 = vmul.f32 1.0, %v1327
        %v1329 = vrcp.pop %v1283
        %v1330 = vmul.f32 1.0, %v1329
        %v1331 = vrcp.pop %v1284
        %v1332 = vmul.f32 1.0, %v1331
        %v1333 = vrcp.pop %v1285
        %v1334 = vmul.f32 1.0, %v1333
        %v1335 = vrcp.pop %v1286
        %v1336 = vmul.f32 1.0, %v1335
        %v1337 = vrcp.pop %v1287
        %v1338 = vmul.f32 1.0, %v1337
        %v1339 = vrcp.pop %v1288
        %v1340 = vmul.f32 1.0, %v1339
        %v1341 = vrcp.pop %v1289
        %v1342 = vmul.f32 1.0, %v1341
        %v1343 = vrcp.pop %v1290
        %v1344 = vmul.f32 1.0, %v1343
        %v1345 = vrcp.pop %v1291
        %v1346 = vmul.f32 1.0, %v1345
        %v1347 = vrcp.pop %v1292
        %v1348 = vmul.f32 1.0, %v1347
        %v1349 = vrcp.pop %v1293
        %v1350 = vmul.f32 1.0, %v1349
        %v1351 = vrcp.pop %v1294
        %v1352 = vmul.f32 1.0, %v1351
        %v1353 = vrcp.pop %v1295
        %v1354 = vmul.f32 1.0, %v1353
        %v1355 = vrcp.pop %v1296
        %v1356 = vmul.f32 1.0, %v1355
        %v1357 = vrcp.pop %v1297
        %v1358 = vmul.f32 1.0, %v1357
        %v1359 = vrcp.pop %v1298
        %v1360 = vmul.f32 1.0, %v1359
        %v1361 = vrcp.pop %v1299
        %v1362 = vmul.f32 1.0, %v1361
        %v1363 = vrcp.pop %v1300
        %v1364 = vmul.f32 1.0, %v1363
        %v1365 = vmul.f32 %v758, %v1302
        %v1366 = vmul.f32 %v763, %v1304
        %v1367 = vmul.f32 %v768, %v1306
        %v1368 = vmul.f32 %v773, %v1308
        %v1369 = vmul.f32 %v778, %v1310
        %v1370 = vmul.f32 %v783, %v1312
        %v1371 = vmul.f32 %v788, %v1314
        %v1372 = vmul.f32 %v793, %v1316
        %v1373 = vmul.f32 %v798, %v1318
        %v1374 = vmul.f32 %v803, %v1320
        %v1375 = vmul.f32 %v808, %v1322
        %v1376 = vmul.f32 %v813, %v1324
        %v1377 = vmul.f32 %v818, %v1326
        %v1378 = vmul.f32 %v823, %v1328
        %v1379 = vmul.f32 %v828, %v1330
        %v1380 = vmul.f32 %v833, %v1332
        %v1381 = vmul.f32 %v838, %v1334
        %v1382 = vmul.f32 %v843, %v1336
        %v1383 = vmul.f32 %v848, %v1338
        %v1384 = vmul.f32 %v853, %v1340
        %v1385 = vmul.f32 %v858, %v1342
        %v1386 = vmul.f32 %v863, %v1344
        %v1387 = vmul.f32 %v868, %v1346
        %v1388 = vmul.f32 %v873, %v1348
        %v1389 = vmul.f32 %v878, %v1350
        %v1390 = vmul.f32 %v883, %v1352
        %v1391 = vmul.f32 %v888, %v1354
        %v1392 = vmul.f32 %v893, %v1356
        %v1393 = vmul.f32 %v898, %v1358
        %v1394 = vmul.f32 %v903, %v1360
        %v1395 = vmul.f32 %v908, %v1362
        %v1396 = vmul.f32 %v913, %v1364
        %1397 = vst.msk [vmem:[%s322] sm:$0xff] %vm1140, %v1365
        %1398 = vst.msk [vmem:[%s322 + $0x8] sm:$0xff] %vm1140, %v1366
        %1399 = vst.msk [vmem:[%s322 + $0x10] sm:$0xff] %vm1140, %v1367
        %1400 = vst.msk [vmem:[%s322 + $0x18] sm:$0xff] %vm1140, %v1368
        %1401 = vst.msk [vmem:[%s322 + $0x20] sm:$0xff] %vm1140, %v1369
        %1402 = vst.msk [vmem:[%s322 + $0x28] sm:$0xff] %vm1140, %v1370
        %1403 = vst.msk [vmem:[%s322 + $0x30] sm:$0xff] %vm1140, %v1371
        %1404 = vst.msk [vmem:[%s322 + $0x38] sm:$0xff] %vm1140, %v1372
        %1405 = vst.msk [vmem:[%s322 + $0x40] sm:$0xff] %vm1140, %v1373
        %1406 = vst.msk [vmem:[%s322 + $0x48] sm:$0xff] %vm1140, %v1374
        %1407 = vst.msk [vmem:[%s322 + $0x50] sm:$0xff] %vm1140, %v1375
        %1408 = vst.msk [vmem:[%s322 + $0x58] sm:$0xff] %vm1140, %v1376
        %1409 = vst.msk [vmem:[%s322 + $0x60] sm:$0xff] %vm1140, %v1377
        %1410 = vst.msk [vmem:[%s322 + $0x68] sm:$0xff] %vm1140, %v1378
        %1411 = vst.msk [vmem:[%s322 + $0x70] sm:$0xff] %vm1140, %v1379
        %1412 = vst.msk [vmem:[%s322 + $0x78] sm:$0xff] %vm1140, %v1380
        %1413 = vst.msk [vmem:[%s322 + $0x80] sm:$0xff] %vm1140, %v1381
        %1414 = vst.msk [vmem:[%s322 + $0x88] sm:$0xff] %vm1140, %v1382
        %1415 = vst.msk [vmem:[%s322 + $0x90] sm:$0xff] %vm1140, %v1383
        %1416 = vst.msk [vmem:[%s322 + $0x98] sm:$0xff] %vm1140, %v1384
        %1417 = vst.msk [vmem:[%s322 + $0xa0] sm:$0xff] %vm1140, %v1385
        %1418 = vst.msk [vmem:[%s322 + $0xa8] sm:$0xff] %vm1140, %v1386
        %1419 = vst.msk [vmem:[%s322 + $0xb0] sm:$0xff] %vm1140, %v1387
        %1420 = vst.msk [vmem:[%s322 + $0xb8] sm:$0xff] %vm1140, %v1388
        %1421 = vst.msk [vmem:[%s322 + $0xc0] sm:$0xff] %vm1140, %v1389
        %1422 = vst.msk [vmem:[%s322 + $0xc8] sm:$0xff] %vm1140, %v1390
        %1423 = vst.msk [vmem:[%s322 + $0xd0] sm:$0xff] %vm1140, %v1391
        %1424 = vst.msk [vmem:[%s322 + $0xd8] sm:$0xff] %vm1140, %v1392
        %1425 = vst.msk [vmem:[%s322 + $0xe0] sm:$0xff] %vm1140, %v1393
        %1426 = vst.msk [vmem:[%s322 + $0xe8] sm:$0xff] %vm1140, %v1394
        %1427 = vst.msk [vmem:[%s322 + $0xf0] sm:$0xff] %vm1140, %v1395
        %1428 = vst.msk [vmem:[%s322 + $0xf8] sm:$0xff] %vm1140, %v1396
        %s1429 = smul.u32 32, %s26
        %p1430 = scmp.lt.s32.totalorder %s25, 1
        %s1431 = scalar_select %p1430, %s25, 1
        %p1432 = scmp.lt.s32.totalorder %s1429, 31
        %s1433 = scalar_select %p1432, %s1429, 31
        %s1434 = smul.addr %s1431, 32
        %s1435 = sadd.s32 %s1433, %s1434
        %s1436 = smul.addr %s1435, 8
        %s1437 = scalar_lea.vmem %s5, %s1436
        %s1438 = smul.u32 32, %s26
        %p1439 = scmp.lt.s32.totalorder %s25, 1
        %s1440 = scalar_select %p1439, %s25, 1
        %p1441 = scmp.lt.s32.totalorder %s1438, 31
        %s1442 = scalar_select %p1441, %s1438, 31
        %s1443 = smul.addr %s1440, 32
        %s1444 = sadd.s32 %s1442, %s1443
        %s1445 = smul.addr %s1444, 8
        %s1446 = scalar_lea.vmem %s6, %s1445
        // Predicated region
        $region45: #{tpu_custom_call.1} parent=39 // pred_check
          %p1447 = pneg %p165
        $region46: #{tpu_custom_call.1} parent=39 // pred_check_branch
          %1449 = sbr.rel (%p1447) target = $region48
        $region47: #{tpu_custom_call.1} parent=39 // pred_region
          %s1450 = smul.u32 32, %s26
        $region48: #{tpu_custom_call.1} parent=39 // pred_fallthru
          _
        // Predicated region
        $region49: #{tpu_custom_call.1} parent=39 // pred_check
          %p1451 = pneg %p193
        $region50: #{tpu_custom_call.1} parent=39 // pred_check_branch
          %1453 = sbr.rel (%p1451) target = $region52
        $region51: #{tpu_custom_call.1} parent=39 // pred_region
          %s1454 = smul.u32 32, %s26
        $region52: #{tpu_custom_call.1} parent=39 // pred_fallthru
          _
      $region40: #{tpu_custom_call.1} parent=5 // pred_fallthru
        _
      %p1455 = scmp.le.s32.totalorder 2, %s16
      // Predicated region
      $region53: #{tpu_custom_call.1} parent=5 // pred_check
        %p1456 = pneg %p1455
      $region54: #{tpu_custom_call.1} parent=5 // pred_check_branch
        %1458 = sbr.rel (%p1456) target = $region56
      $region55: #{tpu_custom_call.1} parent=5 // pred_region
        %s1459 = ssub.s32 %s16, 2
        // Predicated region
        $region57: #{tpu_custom_call.1} parent=55 // pred_check
          %p1460 = pneg %p171
        $region58: #{tpu_custom_call.1} parent=55 // pred_check_branch
          %1462 = sbr.rel (%p1460) target = $region60
        $region59: #{tpu_custom_call.1} parent=55 // pred_region
          %s1463 = smul.u32 32, %s28
          %p1464 = scmp.lt.s32.totalorder %s27, 1
          %s1465 = scalar_select %p1464, %s27, 1
          %p1466 = scmp.lt.s32.totalorder %s1463, 31
          %s1467 = scalar_select %p1466, %s1463, 31
          %s1468 = smul.addr %s1465, 32
          %s1469 = sadd.s32 %s1467, %s1468
          %s1470 = smul.addr %s1469, 8
          %s1471 = scalar_lea.vmem %s5, %s1470
        $region60: #{tpu_custom_call.1} parent=55 // pred_fallthru
          _
        // Predicated region
        $region61: #{tpu_custom_call.1} parent=55 // pred_check
          %p1472 = pneg %p199
        $region62: #{tpu_custom_call.1} parent=55 // pred_check_branch
          %1474 = sbr.rel (%p1472) target = $region64
        $region63: #{tpu_custom_call.1} parent=55 // pred_region
          %s1475 = smul.u32 32, %s28
          %p1476 = scmp.lt.s32.totalorder %s27, 1
          %s1477 = scalar_select %p1476, %s27, 1
          %p1478 = scmp.lt.s32.totalorder %s1475, 31
          %s1479 = scalar_select %p1478, %s1475, 31
          %s1480 = smul.addr %s1477, 32
          %s1481 = sadd.s32 %s1479, %s1480
          %s1482 = smul.addr %s1481, 8
          %s1483 = scalar_lea.vmem %s6, %s1482
        $region64: #{tpu_custom_call.1} parent=55 // pred_fallthru
          _
      $region56: #{tpu_custom_call.1} parent=5 // pred_fallthru
        _
    $region6: #{tpu_custom_call.1} parent=1 // loop_footer
      %s20 = sadd.s32 1, %s16
    $region7: #{tpu_custom_call.1} parent=1 // loop_footer_branch
      %15 = sbr.rel target = $region3
    $region8: #{tpu_custom_call.1} parent=1 // loop_exit
      _
    %1484 = vsyncpa [#allocation3], 1
    %s1485 = scalar_lea.sflag [#allocation3], 1
    %1486 = vsyncpa %s1485, 1

</llo_original>
